<compile_context>
chip_gen: v7x
topology: tpu7x:2x2x1
jax: 0.10.0
libtpu: 0.0.40
codegen_flags: <defaults>
</compile_context>

<pallas_src>
import functools

import jax
import jax.numpy as jnp
from jax.experimental import pallas as pl
from jax.experimental.pallas import tpu as pltpu


# --------------------------------------------------------------------------
# tiling helpers
# --------------------------------------------------------------------------
def _pick_tile_p(P, C, max_tile, err_bytes, vmem_budget=40 * 1024 * 1024):
    """Pixel tile for Kernel A: 128-multiple, VMEM-budgeted (double-buffered).

    Returns (tile_p, pad) where pad pixels must be appended to make P a
    multiple of tile_p.
    """
    # per-pixel bytes across Kernel A's double-buffered streams:
    #   in: logits f32 + dsn f32 + tgt i32; out: neg_err + fg int8
    per_pix = 2 * (C * (4 + 4 + err_bytes + 1) + 4)
    cap = max(128, (vmem_budget // per_pix) // 128 * 128)
    limit = max(128, min(max_tile, cap))

    # prefer a 128-multiple tile that divides P exactly (no padding copy)
    t = (min(limit, P) // 128) * 128
    while t >= 128:
        if P % t == 0:
            return t, 0
        t -= 128

    # otherwise pad P up to a multiple of the largest allowed tile
    t = max(128, (limit // 128) * 128)
    return t, (-P) % t


def _pick_divisor_tile(P, max_tile):
    """Largest 128-multiple tile <= max_tile dividing P (P is 128-aligned)."""
    t = (min(max_tile, P) // 128) * 128
    while t >= 128:
        if P % t == 0:
            return t
        t -= 128
    return P


def _pick_class_block(C):
    # block second-minor dim must be a multiple of 8 or equal the full dim
    return 8 if (C % 8 == 0) else C


# --------------------------------------------------------------------------
# bilinear align_corners resize as two small dense matmuls (MXU)
# --------------------------------------------------------------------------
def _interp_matrix(n_in, n_out):
    if n_out == 1:
        return jnp.zeros((1, n_in), jnp.float32).at[0, 0].set(1.0)
    pos = jnp.arange(n_out, dtype=jnp.float32) * ((n_in - 1) / (n_out - 1))
    i0 = jnp.clip(jnp.floor(pos).astype(jnp.int32), 0, n_in - 1)
    i1 = jnp.minimum(i0 + 1, n_in - 1)
    frac = pos - i0.astype(jnp.float32)
    oh0 = jax.nn.one_hot(i0, n_in, dtype=jnp.float32)
    oh1 = jax.nn.one_hot(i1, n_in, dtype=jnp.float32)
    return (1.0 - frac)[:, None] * oh0 + frac[:, None] * oh1


def interp_bilinear_cm(x, out_h, out_w):
    """x: [C, B, h, w] -> [C, B, out_h, out_w]; F.interpolate(align_corners=True)."""
    _, _, h, w = x.shape
    Ry = _interp_matrix(h, out_h)            # [out_h, h]
    Rx = _interp_matrix(w, out_w)            # [out_w, w]
    hp = jax.lax.Precision.HIGHEST
    y = jnp.einsum('cbhw,Ww->cbhW', x, Rx, precision=hp)
    y = jnp.einsum('Hh,cbhW->cbHW', Ry, y, precision=hp)
    return y


# --------------------------------------------------------------------------
# Kernel A: per pixel-tile, class-major [C, TP]:
#   softmax over classes, NEGATED lovasz errors -(|fg - p_c|), one-hot fg as
#   int8, and a merged per-tile stats row [class counts; CE sum; CE_dsn sum].
# --------------------------------------------------------------------------
def _softmax_err_ce_kernel(logits_ref, dsn_ref, tgt_ref,
                           nerr_ref, fg_ref, stats_ref):
    logits = logits_ref[...]                               # [C, TP] f32
    C, TP = logits.shape
    tgt = tgt_ref[...]                                     # [1, TP] int32 (-1 = pad)
    validf = (tgt >= 0).astype(jnp.float32)                # padded pixels masked out
    cls = jax.lax.broadcasted_iota(jnp.int32, (C, TP), 0)  # class id on sublanes
    fg = (cls == tgt).astype(jnp.float32)                  # one-hot targets

    # softmax over the class (sublane) axis; intermediates reused for CE(pred)
    m = jnp.max(logits, axis=0, keepdims=True)
    e = jnp.exp(logits - m)
    denom = jnp.sum(e, axis=0, keepdims=True)
    probs = e * (1.0 / denom)

    # negated lovasz errors; padded pixels -> 0 so they sort to the tail
    nerr_ref[...] = ((-jnp.abs(fg - probs)) * validf).astype(nerr_ref.dtype)
    fg_ref[...] = fg.astype(jnp.int8)

    counts = jnp.sum(fg, axis=1, keepdims=True)            # [C, 1] class pixel counts

    # CE(pred): reuse lse from the softmax pass (no second exp over logits)
    lse = jnp.log(denom) + m                               # [1, TP]
    logit_t = jnp.sum(logits * fg, axis=0, keepdims=True)  # [1, TP]
    ce = jnp.sum((lse - logit_t) * validf, axis=1, keepdims=True)       # [1, 1]

    # CE(pred_dsn)
    dsn = dsn_ref[...]
    md = jnp.max(dsn, axis=0, keepdims=True)
    lse_d = jnp.log(jnp.sum(jnp.exp(dsn - md), axis=0, keepdims=True)) + md
    lt_d = jnp.sum(dsn * fg, axis=0, keepdims=True)
    ce_d = jnp.sum((lse_d - lt_d) * validf, axis=1, keepdims=True)      # [1, 1]

    # merged stats output: rows [0:C] counts, row C ce, row C+1 ce_dsn
    stats_ref[:, 0:C, :] = counts[None]
    stats_ref[:, C:C + 1, :] = ce[None]
    stats_ref[:, C + 1:C + 2, :] = ce_d[None]


def softmax_err_ce(logits, logits_dsn, tgt, tile_p, err_dtype):
    C, P = logits.shape
    n = P // tile_p
    out_shape = (
        jax.ShapeDtypeStruct((C, P), err_dtype),            # negated lovasz errors
        jax.ShapeDtypeStruct((C, P), jnp.int8),              # one-hot fg
        jax.ShapeDtypeStruct((n, C + 2, 1), jnp.float32),    # per-tile [counts; ce; ce_dsn]
    )
    return pl.pallas_call(
        _softmax_err_ce_kernel,
        out_shape=out_shape,
        grid=(n,),
        in_specs=[
            pl.BlockSpec((C, tile_p), lambda i: (0, i)),
            pl.BlockSpec((C, tile_p), lambda i: (0, i)),
            pl.BlockSpec((1, tile_p), lambda i: (0, i)),
        ],
        out_specs=(
            pl.BlockSpec((C, tile_p), lambda i: (0, i)),
            pl.BlockSpec((C, tile_p), lambda i: (0, i)),
            pl.BlockSpec((1, C + 2, 1), lambda i: (i, 0, 0)),
        ),
        compiler_params=pltpu.CompilerParams(
            dimension_semantics=("parallel",),
            vmem_limit_bytes=48 * 1024 * 1024),
    )(logits, logits_dsn, tgt)


# --------------------------------------------------------------------------
# Kernel B: blocked Lovasz reduction over the (per-class descending-sorted)
# pixel axis. Grid = (class blocks [parallel], pixel tiles [arbitrary]) with
# per-class cum_fg / last-jaccard carries in VMEM; per-class losses are
# accumulated directly in the resident output block and reduced (only_present)
# in the wrapper.
# --------------------------------------------------------------------------
def _lovasz_flat_kernel(nerr_ref, fg_ref, gts_ref, loss_ref, carry_fg, carry_j):
    k = pl.program_id(1)
    CB, TK = nerr_ref.shape

    @pl.when(k == 0)
    def _():
        carry_fg[...] = jnp.zeros_like(carry_fg)
        carry_j[...] = jnp.zeros_like(carry_j)
        loss_ref[...] = jnp.zeros_like(loss_ref)

    errs = -(nerr_ref[...].astype(jnp.float32))             # [CB, TK] sorted desc
    fg = fg_ref[...].astype(jnp.float32)                    # [CB, TK] permuted one-hot
    lane = jax.lax.broadcasted_iota(jnp.int32, (CB, TK), 1)

    # within-tile inclusive prefix sum along lanes (Hillis-Steele roll+add on
    # the XLU/VPU: no TKxTK triu scratch, no MXU M-dim waste)
    x = fg
    s = 1
    while s < TK:
        x = x + jnp.where(lane >= s, pltpu.roll(x, shift=s, axis=1), 0.0)
        s *= 2
    cum_fg = carry_fg[...] + x                               # global cumsum(fg)

    gts = gts_ref[...]                                       # [CB, 1] total counts
    pos = (lane + 1 + k * TK).astype(jnp.float32)            # global 1-based index
    intersection = gts - cum_fg
    union = gts + (pos - cum_fg)                             # cumsum(1-fg) = pos - cumsum(fg)
    jaccard = 1.0 - intersection / union

    # lovasz_grad: first difference along the globally sorted axis
    j_prev = pltpu.roll(jaccard, shift=1, axis=1)
    j_prev = jnp.where(lane == 0, carry_j[...], j_prev)
    grad = jaccard - j_prev

    loss_ref[...] = loss_ref[...] + jnp.sum(errs * grad, axis=1, keepdims=True)

    # carries for the next tile via static last-lane slices (no masked reduce)
    carry_fg[...] = cum_fg[:, TK - 1:TK]
    carry_j[...] = jaccard[:, TK - 1:TK]


def lovasz_flat(neg_errs_sorted, fg_sorted, gts, tile_k, class_block):
    C, P = neg_errs_sorted.shape
    n_cb = C // class_block
    n_k = P // tile_k
    return pl.pallas_call(
        _lovasz_flat_kernel,
        out_shape=jax.ShapeDtypeStruct((C, 1), jnp.float32),   # per-class losses
        grid=(n_cb, n_k),
        in_specs=[
            pl.BlockSpec((class_block, tile_k), lambda c, k: (c, k)),
            pl.BlockSpec((class_block, tile_k), lambda c, k: (c, k)),
            pl.BlockSpec((class_block, 1), lambda c, k: (c, 0)),
        ],
        out_specs=pl.BlockSpec((class_block, 1), lambda c, k: (c, 0)),
        scratch_shapes=[
            pltpu.VMEM((class_block, 1), jnp.float32),   # carry: cumsum(fg) so far
            pltpu.VMEM((class_block, 1), jnp.float32),   # carry: last jaccard value
        ],
        compiler_params=pltpu.CompilerParams(
            dimension_semantics=("parallel", "arbitrary"),
            vmem_limit_bytes=32 * 1024 * 1024),
    )(neg_errs_sorted, fg_sorted, gts)


# --------------------------------------------------------------------------
# Full forward (ignore_index=None, only_present=True).
# --------------------------------------------------------------------------
@functools.partial(jax.jit,
                   static_argnames=("max_tile_p", "max_tile_k", "use_bf16_errors"))
def abr_lovasz_ce_loss(pred0, pred1, targets, *,
                       max_tile_p=32768, max_tile_k=4096, use_bf16_errors=False):
    """pred0/pred1: [B, C, h', w'] logits (preds[0] / preds[-1]); targets: [B, H, W] int."""
    h, w = targets.shape[1], targets.shape[2]
    B, C = pred0.shape[0], pred0.shape[1]
    err_dtype = jnp.bfloat16 if use_bf16_errors else jnp.float32

    # class-major at LOW resolution (cheap transpose), then matmul-form
    # bilinear upsample -> output is already [C, B, H, W]; flatten is a view.
    p0 = jnp.transpose(pred0.astype(jnp.float32), (1, 0, 2, 3))
    p1 = jnp.transpose(pred1.astype(jnp.float32), (1, 0, 2, 3))
    pred = interp_bilinear_cm(p0, h, w)            # [C, B, H, W]
    pred_dsn = interp_bilinear_cm(p1, h, w)

    P = B * h * w
    logits = pred.reshape(C, P)                    # pixel order (b, y, x) = flatten_probas
    logits_dsn = pred_dsn.reshape(C, P)
    tgt = targets.reshape(1, P).astype(jnp.int32)

    err_bytes = 2 if use_bf16_errors else 4
    tile_p, pad = _pick_tile_p(P, C, max_tile_p, err_bytes)
    if pad:
        # padded pixels: tgt=-1 -> fg=0, err=0, excluded from CE sums/counts
        logits = jnp.pad(logits, ((0, 0), (0, pad)))
        logits_dsn = jnp.pad(logits_dsn, ((0, 0), (0, pad)))
        tgt = jnp.pad(tgt, ((0, 0), (0, pad)), constant_values=-1)
    P_pad = P + pad

    neg_err, fg_i8, stats = softmax_err_ce(logits, logits_dsn, tgt, tile_p, err_dtype)

    counts = jnp.sum(stats[:, 0:C, 0], axis=0)                 # [C] class pixel counts
    gts = counts[:, None]                                      # [C, 1]
    loss_ce = jnp.sum(stats[:, C, 0]) / P                      # CrossEntropyLoss, mean
    loss_dsn = jnp.sum(stats[:, C + 1, 0]) / P

    # TODO(synk): the per-class descending sort (torch.sort) has no clean
    # Pallas/Mosaic lowering; done with jax.lax.sort in XLA glue (negated-error
    # key + int8 fg payload, ascending == errors descending).
    neg_sorted, fg_sorted = jax.lax.sort((neg_err, fg_i8), dimension=1, num_keys=1)

    tile_k = _pick_divisor_tile(P_pad, max_tile_k)
    cb = _pick_class_block(C)
    per_class = lovasz_flat(neg_sorted, fg_sorted, gts, tile_k, cb)   # [C, 1]

    present = (counts > 0.0).astype(jnp.float32)               # only_present=True
    num_present = jnp.sum(present)
    lovasz = jnp.sum(per_class[:, 0] * present) / jnp.maximum(num_present, 1.0)

    return loss_ce + lovasz + 0.4 * loss_dsn


if __name__ == "__main__":
    key = jax.random.PRNGKey(0)
    k1, k2, k3 = jax.random.split(key, 3)

    B, C = 2, 8
    hs, ws = 16, 16          # raw prediction spatial size
    H, W = 32, 32            # target spatial size (interpolated up)

    pred0 = jax.random.normal(k1, (B, C, hs, ws), dtype=jnp.float32)
    pred1 = jax.random.normal(k2, (B, C, hs, ws), dtype=jnp.float32)
    targets = jax.random.randint(k3, (B, H, W), 0, C, dtype=jnp.int32)

    # small tile caps so the demo exercises the multi-tile grid and carry logic
    loss = abr_lovasz_ce_loss(pred0, pred1, targets, max_tile_p=512, max_tile_k=512)
    jax.block_until_ready(loss)
    print("KERNEL_OK")
</pallas_src>

<mosaic_0001>
module attributes {stable_mosaic.version = 11 : i64} {
  func.func @_softmax_err_ce_kernel(%arg0: i32, %arg1: memref<8x512xf32, #tpu.memory_space<vmem>>, %arg2: memref<8x512xf32, #tpu.memory_space<vmem>>, %arg3: memref<1x512xi32, #tpu.memory_space<vmem>>, %arg4: memref<8x512xf32, #tpu.memory_space<vmem>>, %arg5: memref<8x512xi8, #tpu.memory_space<vmem>>, %arg6: memref<1x10x1xf32, #tpu.memory_space<vmem>>) attributes {dimension_semantics = [#tpu.dimension_semantics<parallel>], iteration_bounds = array<i64: 4>, scalar_prefetch = 0 : i64, scratch_operands = 0 : i64, tpu.core_type = #tpu.core_type<tc>, window_params = [{transform_indices = @transform_0, window_bounds = array<i64: 8, 512>}, {transform_indices = @transform_1, window_bounds = array<i64: 8, 512>}, {transform_indices = @transform_2, window_bounds = array<i64: 1, 512>}, {transform_indices = @transform_3, window_bounds = array<i64: 8, 512>}, {transform_indices = @transform_4, window_bounds = array<i64: 8, 512>}, {transform_indices = @transform_5, window_bounds = array<i64: 1, 10, 1>}]} {
    %c0 = arith.constant 0 : index
    %c0_0 = arith.constant 0 : index
    %0 = vector.load %arg1[%c0, %c0_0] : memref<8x512xf32, #tpu.memory_space<vmem>>, vector<8x512xf32>
    %c0_1 = arith.constant 0 : index
    %c0_2 = arith.constant 0 : index
    %1 = vector.load %arg3[%c0_1, %c0_2] : memref<1x512xi32, #tpu.memory_space<vmem>>, vector<1x512xi32>
    %c0_i32 = arith.constant 0 : i32
    %2 = vector.broadcast %c0_i32 : i32 to vector<1x512xi32>
    %3 = arith.cmpi sge, %1, %2 : vector<1x512xi32>
    %4 = arith.extui %3 : vector<1x512xi1> to vector<1x512xi32>
    %5 = arith.sitofp %4 : vector<1x512xi32> to vector<1x512xf32>
    %6 = tpu.iota {dimensions = array<i32: 0>} : vector<8x512xi32>
    %7 = vector.broadcast %1 : vector<1x512xi32> to vector<8x512xi32>
    %8 = arith.cmpi eq, %6, %7 : vector<8x512xi32>
    %9 = arith.extui %8 : vector<8x512xi1> to vector<8x512xi32>
    %10 = arith.sitofp %9 : vector<8x512xi32> to vector<8x512xf32>
    %cst = arith.constant dense<0xFF800000> : vector<512xf32>
    %11 = vector.multi_reduction <maximumf>, %0, %cst [0] : vector<8x512xf32> to vector<512xf32>
    %12 = vector.shape_cast %11 : vector<512xf32> to vector<1x512xf32>
    %13 = vector.broadcast %12 : vector<1x512xf32> to vector<8x512xf32>
    %14 = arith.subf %0, %13 : vector<8x512xf32>
    %15 = math.exp %14 : vector<8x512xf32>
    %cst_3 = arith.constant dense<0.000000e+00> : vector<512xf32>
    %16 = vector.multi_reduction <add>, %15, %cst_3 [0] : vector<8x512xf32> to vector<512xf32>
    %17 = vector.shape_cast %16 : vector<512xf32> to vector<1x512xf32>
    %cst_4 = arith.constant 1.000000e+00 : f32
    %18 = vector.broadcast %cst_4 : f32 to vector<1x512xf32>
    %19 = arith.divf %18, %17 : vector<1x512xf32>
    %20 = vector.broadcast %19 : vector<1x512xf32> to vector<8x512xf32>
    %21 = arith.mulf %15, %20 : vector<8x512xf32>
    %22 = arith.subf %10, %21 : vector<8x512xf32>
    %23 = math.absf %22 : vector<8x512xf32>
    %cst_5 = arith.constant 0.000000e+00 : f32
    %24 = vector.broadcast %cst_5 : f32 to vector<8x512xf32>
    %25 = arith.subf %24, %23 : vector<8x512xf32>
    %26 = vector.broadcast %5 : vector<1x512xf32> to vector<8x512xf32>
    %27 = arith.mulf %25, %26 : vector<8x512xf32>
    %c0_6 = arith.constant 0 : index
    %c0_7 = arith.constant 0 : index
    %28 = vector.load %arg4[%c0_6, %c0_7] : memref<8x512xf32, #tpu.memory_space<vmem>>, vector<8x512xf32>
    tpu.vector_store %arg4[%c0_6, %c0_7], %27 {strides = array<i32>} : memref<8x512xf32, #tpu.memory_space<vmem>>, vector<8x512xf32>,
    %29 = arith.fptosi %10 : vector<8x512xf32> to vector<8x512xi8>
    %c0_8 = arith.constant 0 : index
    %c0_9 = arith.constant 0 : index
    %30 = vector.load %arg5[%c0_8, %c0_9] : memref<8x512xi8, #tpu.memory_space<vmem>>, vector<8x512xi8>
    tpu.vector_store %arg5[%c0_8, %c0_9], %29 {strides = array<i32>} : memref<8x512xi8, #tpu.memory_space<vmem>>, vector<8x512xi8>,
    %cst_10 = arith.constant dense<0.000000e+00> : vector<8xf32>
    %31 = vector.multi_reduction <add>, %10, %cst_10 [1] : vector<8x512xf32> to vector<8xf32>
    %32 = vector.shape_cast %31 : vector<8xf32> to vector<8x1xf32>
    %33 = math.log %17 : vector<1x512xf32>
    %34 = arith.addf %33, %12 : vector<1x512xf32>
    %35 = arith.mulf %0, %10 : vector<8x512xf32>
    %cst_11 = arith.constant dense<0.000000e+00> : vector<512xf32>
    %36 = vector.multi_reduction <add>, %35, %cst_11 [0] : vector<8x512xf32> to vector<512xf32>
    %37 = vector.shape_cast %36 : vector<512xf32> to vector<1x512xf32>
    %38 = arith.subf %34, %37 : vector<1x512xf32>
    %39 = arith.mulf %38, %5 : vector<1x512xf32>
    %cst_12 = arith.constant dense<0.000000e+00> : vector<1xf32>
    %40 = vector.multi_reduction <add>, %39, %cst_12 [1] : vector<1x512xf32> to vector<1xf32>
    %41 = vector.shape_cast %40 : vector<1xf32> to vector<1x1xf32>
    %c0_13 = arith.constant 0 : index
    %c0_14 = arith.constant 0 : index
    %42 = vector.load %arg2[%c0_13, %c0_14] : memref<8x512xf32, #tpu.memory_space<vmem>>, vector<8x512xf32>
    %cst_15 = arith.constant dense<0xFF800000> : vector<512xf32>
    %43 = vector.multi_reduction <maximumf>, %42, %cst_15 [0] : vector<8x512xf32> to vector<512xf32>
    %44 = vector.shape_cast %43 : vector<512xf32> to vector<1x512xf32>
    %45 = vector.broadcast %44 : vector<1x512xf32> to vector<8x512xf32>
    %46 = arith.subf %42, %45 : vector<8x512xf32>
    %47 = math.exp %46 : vector<8x512xf32>
    %cst_16 = arith.constant dense<0.000000e+00> : vector<512xf32>
    %48 = vector.multi_reduction <add>, %47, %cst_16 [0] : vector<8x512xf32> to vector<512xf32>
    %49 = vector.shape_cast %48 : vector<512xf32> to vector<1x512xf32>
    %50 = math.log %49 : vector<1x512xf32>
    %51 = arith.addf %50, %44 : vector<1x512xf32>
    %52 = arith.mulf %42, %10 : vector<8x512xf32>
    %cst_17 = arith.constant dense<0.000000e+00> : vector<512xf32>
    %53 = vector.multi_reduction <add>, %52, %cst_17 [0] : vector<8x512xf32> to vector<512xf32>
    %54 = vector.shape_cast %53 : vector<512xf32> to vector<1x512xf32>
    %55 = arith.subf %51, %54 : vector<1x512xf32>
    %56 = arith.mulf %55, %5 : vector<1x512xf32>
    %cst_18 = arith.constant dense<0.000000e+00> : vector<1xf32>
    %57 = vector.multi_reduction <add>, %56, %cst_18 [1] : vector<1x512xf32> to vector<1xf32>
    %58 = vector.shape_cast %57 : vector<1xf32> to vector<1x1xf32>
    %59 = vector.shape_cast %32 : vector<8x1xf32> to vector<1x8x1xf32>
    %c0_19 = arith.constant 0 : index
    %c0_20 = arith.constant 0 : index
    %c0_21 = arith.constant 0 : index
    %60 = vector.load %arg6[%c0_19, %c0_20, %c0_21] : memref<1x10x1xf32, #tpu.memory_space<vmem>>, vector<1x8x1xf32>
    tpu.vector_store %arg6[%c0_19, %c0_20, %c0_21], %59 {strides = array<i32>} : memref<1x10x1xf32, #tpu.memory_space<vmem>>, vector<1x8x1xf32>,
    %61 = vector.shape_cast %41 : vector<1x1xf32> to vector<1x1x1xf32>
    %c0_22 = arith.constant 0 : index
    %c8 = arith.constant 8 : index
    %c0_23 = arith.constant 0 : index
    %62 = vector.load %arg6[%c0_22, %c8, %c0_23] : memref<1x10x1xf32, #tpu.memory_space<vmem>>, vector<1x1x1xf32>
    tpu.vector_store %arg6[%c0_22, %c8, %c0_23], %61 {strides = array<i32>} : memref<1x10x1xf32, #tpu.memory_space<vmem>>, vector<1x1x1xf32>,
    %63 = vector.shape_cast %58 : vector<1x1xf32> to vector<1x1x1xf32>
    %c0_24 = arith.constant 0 : index
    %c9 = arith.constant 9 : index
    %c0_25 = arith.constant 0 : index
    %64 = vector.load %arg6[%c0_24, %c9, %c0_25] : memref<1x10x1xf32, #tpu.memory_space<vmem>>, vector<1x1x1xf32>
    tpu.vector_store %arg6[%c0_24, %c9, %c0_25], %63 {strides = array<i32>} : memref<1x10x1xf32, #tpu.memory_space<vmem>>, vector<1x1x1xf32>,
    return
  }
  func.func @transform_0(%arg0: i32) -> (i32, i32) {
    %c0_i32 = arith.constant 0 : i32
    %c0_i32_0 = arith.constant 0 : i32
    return %c0_i32, %arg0 : i32, i32
  }
  func.func @transform_1(%arg0: i32) -> (i32, i32) {
    %c0_i32 = arith.constant 0 : i32
    %c0_i32_0 = arith.constant 0 : i32
    return %c0_i32, %arg0 : i32, i32
  }
  func.func @transform_2(%arg0: i32) -> (i32, i32) {
    %c0_i32 = arith.constant 0 : i32
    %c0_i32_0 = arith.constant 0 : i32
    return %c0_i32, %arg0 : i32, i32
  }
  func.func @transform_3(%arg0: i32) -> (i32, i32) {
    %c0_i32 = arith.constant 0 : i32
    %c0_i32_0 = arith.constant 0 : i32
    return %c0_i32, %arg0 : i32, i32
  }
  func.func @transform_4(%arg0: i32) -> (i32, i32) {
    %c0_i32 = arith.constant 0 : i32
    %c0_i32_0 = arith.constant 0 : i32
    return %c0_i32, %arg0 : i32, i32
  }
  func.func @transform_5(%arg0: i32) -> (i32, i32, i32) {
    %c0_i32 = arith.constant 0 : i32
    %c0_i32_0 = arith.constant 0 : i32
    %c0_i32_1 = arith.constant 0 : i32
    return %arg0, %c0_i32, %c0_i32_0 : i32, i32, i32
  }
}

module attributes {stable_mosaic.version = 11 : i64} {
  func.func @_lovasz_flat_kernel(%arg0: i32, %arg1: i32, %arg2: memref<8x512xf32, #tpu.memory_space<vmem>>, %arg3: memref<8x512xi8, #tpu.memory_space<vmem>>, %arg4: memref<8x1xf32, #tpu.memory_space<vmem>>, %arg5: memref<8x1xf32, #tpu.memory_space<vmem>>, %arg6: memref<8x1xf32, #tpu.memory_space<vmem>>, %arg7: memref<8x1xf32, #tpu.memory_space<vmem>>) attributes {dimension_semantics = [#tpu.dimension_semantics<parallel>, #tpu.dimension_semantics<arbitrary>], iteration_bounds = array<i64: 1, 4>, scalar_prefetch = 0 : i64, scratch_operands = 2 : i64, tpu.core_type = #tpu.core_type<tc>, window_params = [{transform_indices = @transform_0, window_bounds = array<i64: 8, 512>}, {transform_indices = @transform_1, window_bounds = array<i64: 8, 512>}, {transform_indices = @transform_2, window_bounds = array<i64: 8, 1>}, {transform_indices = @transform_3, window_bounds = array<i64: 8, 1>}]} {
    %c0_i32 = arith.constant 0 : i32
    %0 = arith.cmpi eq, %arg1, %c0_i32 : i32
    %1 = arith.extui %0 : i1 to i32
    %c0_i32_0 = arith.constant 0 : i32
    %2 = arith.cmpi ne, %1, %c0_i32_0 : i32
    scf.if %2 {
      %cst_41 = arith.constant 0.000000e+00 : f32
      %99 = vector.broadcast %cst_41 : f32 to vector<8x1xf32>
      %c0_42 = arith.constant 0 : index
      %c0_43 = arith.constant 0 : index
      %100 = vector.load %arg6[%c0_42, %c0_43] : memref<8x1xf32, #tpu.memory_space<vmem>>, vector<8x1xf32>
      tpu.vector_store %arg6[%c0_42, %c0_43], %99 {strides = array<i32>} : memref<8x1xf32, #tpu.memory_space<vmem>>, vector<8x1xf32>,
      %cst_44 = arith.constant 0.000000e+00 : f32
      %101 = vector.broadcast %cst_44 : f32 to vector<8x1xf32>
      %c0_45 = arith.constant 0 : index
      %c0_46 = arith.constant 0 : index
      %102 = vector.load %arg7[%c0_45, %c0_46] : memref<8x1xf32, #tpu.memory_space<vmem>>, vector<8x1xf32>
      tpu.vector_store %arg7[%c0_45, %c0_46], %101 {strides = array<i32>} : memref<8x1xf32, #tpu.memory_space<vmem>>, vector<8x1xf32>,
      %cst_47 = arith.constant 0.000000e+00 : f32
      %103 = vector.broadcast %cst_47 : f32 to vector<8x1xf32>
      %c0_48 = arith.constant 0 : index
      %c0_49 = arith.constant 0 : index
      %104 = vector.load %arg5[%c0_48, %c0_49] : memref<8x1xf32, #tpu.memory_space<vmem>>, vector<8x1xf32>
      tpu.vector_store %arg5[%c0_48, %c0_49], %103 {strides = array<i32>} : memref<8x1xf32, #tpu.memory_space<vmem>>, vector<8x1xf32>,
    } else {
    }
    %c0 = arith.constant 0 : index
    %c0_1 = arith.constant 0 : index
    %3 = vector.load %arg2[%c0, %c0_1] : memref<8x512xf32, #tpu.memory_space<vmem>>, vector<8x512xf32>
    %cst = arith.constant 0.000000e+00 : f32
    %4 = vector.broadcast %cst : f32 to vector<8x512xf32>
    %5 = arith.subf %4, %3 : vector<8x512xf32>
    %c0_2 = arith.constant 0 : index
    %c0_3 = arith.constant 0 : index
    %6 = vector.load %arg3[%c0_2, %c0_3] : memref<8x512xi8, #tpu.memory_space<vmem>>, vector<8x512xi8>
    %7 = arith.sitofp %6 : vector<8x512xi8> to vector<8x512xf32>
    %8 = tpu.iota {dimensions = array<i32: 1>} : vector<8x512xi32>
    %c1_i32 = arith.constant 1 : i32
    %9 = vector.broadcast %c1_i32 : i32 to vector<8x512xi32>
    %10 = arith.cmpi sge, %8, %9 : vector<8x512xi32>
    %c1_i32_4 = arith.constant 1 : i32
    %11 = tpu.dynamic_rotate %7 by %c1_i32_4 dim 1 : vector<8x512xf32>, i32 -> vector<8x512xf32>
    %cst_5 = arith.constant 0.000000e+00 : f32
    %12 = vector.broadcast %cst_5 : f32 to vector<8x512xf32>
    %13 = arith.select %10, %11, %12 : vector<8x512xi1>, vector<8x512xf32>
    %14 = arith.addf %7, %13 : vector<8x512xf32>
    %c2_i32 = arith.constant 2 : i32
    %15 = vector.broadcast %c2_i32 : i32 to vector<8x512xi32>
    %16 = arith.cmpi sge, %8, %15 : vector<8x512xi32>
    %c2_i32_6 = arith.constant 2 : i32
    %17 = tpu.dynamic_rotate %14 by %c2_i32_6 dim 1 : vector<8x512xf32>, i32 -> vector<8x512xf32>
    %cst_7 = arith.constant 0.000000e+00 : f32
    %18 = vector.broadcast %cst_7 : f32 to vector<8x512xf32>
    %19 = arith.select %16, %17, %18 : vector<8x512xi1>, vector<8x512xf32>
    %20 = arith.addf %14, %19 : vector<8x512xf32>
    %c4_i32 = arith.constant 4 : i32
    %21 = vector.broadcast %c4_i32 : i32 to vector<8x512xi32>
    %22 = arith.cmpi sge, %8, %21 : vector<8x512xi32>
    %c4_i32_8 = arith.constant 4 : i32
    %23 = tpu.dynamic_rotate %20 by %c4_i32_8 dim 1 : vector<8x512xf32>, i32 -> vector<8x512xf32>
    %cst_9 = arith.constant 0.000000e+00 : f32
    %24 = vector.broadcast %cst_9 : f32 to vector<8x512xf32>
    %25 = arith.select %22, %23, %24 : vector<8x512xi1>, vector<8x512xf32>
    %26 = arith.addf %20, %25 : vector<8x512xf32>
    %c8_i32 = arith.constant 8 : i32
    %27 = vector.broadcast %c8_i32 : i32 to vector<8x512xi32>
    %28 = arith.cmpi sge, %8, %27 : vector<8x512xi32>
    %c8_i32_10 = arith.constant 8 : i32
    %29 = tpu.dynamic_rotate %26 by %c8_i32_10 dim 1 : vector<8x512xf32>, i32 -> vector<8x512xf32>
    %cst_11 = arith.constant 0.000000e+00 : f32
    %30 = vector.broadcast %cst_11 : f32 to vector<8x512xf32>
    %31 = arith.select %28, %29, %30 : vector<8x512xi1>, vector<8x512xf32>
    %32 = arith.addf %26, %31 : vector<8x512xf32>
    %c16_i32 = arith.constant 16 : i32
    %33 = vector.broadcast %c16_i32 : i32 to vector<8x512xi32>
    %34 = arith.cmpi sge, %8, %33 : vector<8x512xi32>
    %c16_i32_12 = arith.constant 16 : i32
    %35 = tpu.dynamic_rotate %32 by %c16_i32_12 dim 1 : vector<8x512xf32>, i32 -> vector<8x512xf32>
    %cst_13 = arith.constant 0.000000e+00 : f32
    %36 = vector.broadcast %cst_13 : f32 to vector<8x512xf32>
    %37 = arith.select %34, %35, %36 : vector<8x512xi1>, vector<8x512xf32>
    %38 = arith.addf %32, %37 : vector<8x512xf32>
    %c32_i32 = arith.constant 32 : i32
    %39 = vector.broadcast %c32_i32 : i32 to vector<8x512xi32>
    %40 = arith.cmpi sge, %8, %39 : vector<8x512xi32>
    %c32_i32_14 = arith.constant 32 : i32
    %41 = tpu.dynamic_rotate %38 by %c32_i32_14 dim 1 : vector<8x512xf32>, i32 -> vector<8x512xf32>
    %cst_15 = arith.constant 0.000000e+00 : f32
    %42 = vector.broadcast %cst_15 : f32 to vector<8x512xf32>
    %43 = arith.select %40, %41, %42 : vector<8x512xi1>, vector<8x512xf32>
    %44 = arith.addf %38, %43 : vector<8x512xf32>
    %c64_i32 = arith.constant 64 : i32
    %45 = vector.broadcast %c64_i32 : i32 to vector<8x512xi32>
    %46 = arith.cmpi sge, %8, %45 : vector<8x512xi32>
    %c64_i32_16 = arith.constant 64 : i32
    %47 = tpu.dynamic_rotate %44 by %c64_i32_16 dim 1 : vector<8x512xf32>, i32 -> vector<8x512xf32>
    %cst_17 = arith.constant 0.000000e+00 : f32
    %48 = vector.broadcast %cst_17 : f32 to vector<8x512xf32>
    %49 = arith.select %46, %47, %48 : vector<8x512xi1>, vector<8x512xf32>
    %50 = arith.addf %44, %49 : vector<8x512xf32>
    %c128_i32 = arith.constant 128 : i32
    %51 = vector.broadcast %c128_i32 : i32 to vector<8x512xi32>
    %52 = arith.cmpi sge, %8, %51 : vector<8x512xi32>
    %c128_i32_18 = arith.constant 128 : i32
    %53 = tpu.dynamic_rotate %50 by %c128_i32_18 dim 1 : vector<8x512xf32>, i32 -> vector<8x512xf32>
    %cst_19 = arith.constant 0.000000e+00 : f32
    %54 = vector.broadcast %cst_19 : f32 to vector<8x512xf32>
    %55 = arith.select %52, %53, %54 : vector<8x512xi1>, vector<8x512xf32>
    %56 = arith.addf %50, %55 : vector<8x512xf32>
    %c256_i32 = arith.constant 256 : i32
    %57 = vector.broadcast %c256_i32 : i32 to vector<8x512xi32>
    %58 = arith.cmpi sge, %8, %57 : vector<8x512xi32>
    %c256_i32_20 = arith.constant 256 : i32
    %59 = tpu.dynamic_rotate %56 by %c256_i32_20 dim 1 : vector<8x512xf32>, i32 -> vector<8x512xf32>
    %cst_21 = arith.constant 0.000000e+00 : f32
    %60 = vector.broadcast %cst_21 : f32 to vector<8x512xf32>
    %61 = arith.select %58, %59, %60 : vector<8x512xi1>, vector<8x512xf32>
    %62 = arith.addf %56, %61 : vector<8x512xf32>
    %c0_22 = arith.constant 0 : index
    %c0_23 = arith.constant 0 : index
    %63 = vector.load %arg6[%c0_22, %c0_23] : memref<8x1xf32, #tpu.memory_space<vmem>>, vector<8x1xf32>
    %64 = vector.broadcast %63 : vector<8x1xf32> to vector<8x512xf32>
    %65 = arith.addf %64, %62 : vector<8x512xf32>
    %c0_24 = arith.constant 0 : index
    %c0_25 = arith.constant 0 : index
    %66 = vector.load %arg4[%c0_24, %c0_25] : memref<8x1xf32, #tpu.memory_space<vmem>>, vector<8x1xf32>
    %c1_i32_26 = arith.constant 1 : i32
    %67 = vector.broadcast %c1_i32_26 : i32 to vector<8x512xi32>
    %68 = arith.addi %8, %67 : vector<8x512xi32>
    %c512_i32 = arith.constant 512 : i32
    %69 = arith.muli %arg1, %c512_i32 : i32
    %70 = vector.broadcast %69 : i32 to vector<8x512xi32>
    %71 = arith.addi %68, %70 : vector<8x512xi32>
    %72 = arith.sitofp %71 : vector<8x512xi32> to vector<8x512xf32>
    %73 = vector.broadcast %66 : vector<8x1xf32> to vector<8x512xf32>
    %74 = arith.subf %73, %65 : vector<8x512xf32>
    %75 = arith.subf %72, %65 : vector<8x512xf32>
    %76 = vector.broadcast %66 : vector<8x1xf32> to vector<8x512xf32>
    %77 = arith.addf %76, %75 : vector<8x512xf32>
    %78 = arith.divf %74, %77 : vector<8x512xf32>
    %cst_27 = arith.constant 1.000000e+00 : f32
    %79 = vector.broadcast %cst_27 : f32 to vector<8x512xf32>
    %80 = arith.subf %79, %78 : vector<8x512xf32>
    %c1_i32_28 = arith.constant 1 : i32
    %81 = tpu.dynamic_rotate %80 by %c1_i32_28 dim 1 : vector<8x512xf32>, i32 -> vector<8x512xf32>
    %c0_i32_29 = arith.constant 0 : i32
    %82 = vector.broadcast %c0_i32_29 : i32 to vector<8x512xi32>
    %83 = arith.cmpi eq, %8, %82 : vector<8x512xi32>
    %c0_30 = arith.constant 0 : index
    %c0_31 = arith.constant 0 : index
    %84 = vector.load %arg7[%c0_30, %c0_31] : memref<8x1xf32, #tpu.memory_space<vmem>>, vector<8x1xf32>
    %85 = vector.shape_cast %84 : vector<8x1xf32> to vector<8x1xf32>
    %86 = vector.broadcast %85 : vector<8x1xf32> to vector<8x512xf32>
    %87 = arith.select %83, %86, %81 : vector<8x512xi1>, vector<8x512xf32>
    %88 = arith.subf %80, %87 : vector<8x512xf32>
    %c0_32 = arith.constant 0 : index
    %c0_33 = arith.constant 0 : index
    %89 = vector.load %arg5[%c0_32, %c0_33] : memref<8x1xf32, #tpu.memory_space<vmem>>, vector<8x1xf32>
    %90 = arith.mulf %5, %88 : vector<8x512xf32>
    %cst_34 = arith.constant dense<0.000000e+00> : vector<8xf32>
    %91 = vector.multi_reduction <add>, %90, %cst_34 [1] : vector<8x512xf32> to vector<8xf32>
    %92 = vector.shape_cast %91 : vector<8xf32> to vector<8x1xf32>
    %93 = arith.addf %89, %92 : vector<8x1xf32>
    %c0_35 = arith.constant 0 : index
    %c0_36 = arith.constant 0 : index
    %94 = vector.load %arg5[%c0_35, %c0_36] : memref<8x1xf32, #tpu.memory_space<vmem>>, vector<8x1xf32>
    tpu.vector_store %arg5[%c0_35, %c0_36], %93 {strides = array<i32>} : memref<8x1xf32, #tpu.memory_space<vmem>>, vector<8x1xf32>,
    %95 = vector.extract_strided_slice %65 {offsets = [0, 511], sizes = [8, 1], strides = [1, 1]} : vector<8x512xf32> to vector<8x1xf32>
    %c0_37 = arith.constant 0 : index
    %c0_38 = arith.constant 0 : index
    %96 = vector.load %arg6[%c0_37, %c0_38] : memref<8x1xf32, #tpu.memory_space<vmem>>, vector<8x1xf32>
    tpu.vector_store %arg6[%c0_37, %c0_38], %95 {strides = array<i32>} : memref<8x1xf32, #tpu.memory_space<vmem>>, vector<8x1xf32>,
    %97 = vector.extract_strided_slice %80 {offsets = [0, 511], sizes = [8, 1], strides = [1, 1]} : vector<8x512xf32> to vector<8x1xf32>
    %c0_39 = arith.constant 0 : index
    %c0_40 = arith.constant 0 : index
    %98 = vector.load %arg7[%c0_39, %c0_40] : memref<8x1xf32, #tpu.memory_space<vmem>>, vector<8x1xf32>
    tpu.vector_store %arg7[%c0_39, %c0_40], %97 {strides = array<i32>} : memref<8x1xf32, #tpu.memory_space<vmem>>, vector<8x1xf32>,
    return
  }
  func.func @transform_0(%arg0: i32, %arg1: i32) -> (i32, i32) {
    %c0_i32 = arith.constant 0 : i32
    return %arg0, %arg1 : i32, i32
  }
  func.func @transform_1(%arg0: i32, %arg1: i32) -> (i32, i32) {
    %c0_i32 = arith.constant 0 : i32
    return %arg0, %arg1 : i32, i32
  }
  func.func @transform_2(%arg0: i32, %arg1: i32) -> (i32, i32) {
    %c0_i32 = arith.constant 0 : i32
    %c0_i32_0 = arith.constant 0 : i32
    return %arg0, %c0_i32 : i32, i32
  }
  func.func @transform_3(%arg0: i32, %arg1: i32) -> (i32, i32) {
    %c0_i32 = arith.constant 0 : i32
    %c0_i32_0 = arith.constant 0 : i32
    return %arg0, %c0_i32 : i32, i32
  }
}

</mosaic_0001>

<llo_original>
// kernel: abr_lovasz_ce_loss.2
$region0: #{abr_lovasz_ce_loss.2}
  #allocation0 [shape = 'u32[]', space=smem, size = 0x4, offset = 0x4, fixed_abs, tag = 'smem constant byte address 0x4 - core index']
  #allocation1 [shape = 'u32[144,128]{1,0:T(1,128)}', space=vmem, size = 0x12000, scoped, tag = 'internal scratch']
  %s0 = inlined_call_operand.vmem [shape: f32[8,2048], index: 0, kind: input, shape index: {}]
  %s1 = inlined_call_operand.vmem [shape: f32[8,2048], index: 1, kind: input, shape index: {}]
  %s2 = inlined_call_operand.vmem [shape: s32[1,2048], index: 2, kind: input, shape index: {}]
  %s3 = inlined_call_operand.vmem [shape: f32[8,2048], index: 3, kind: output, shape index: {0}]
  %s4 = inlined_call_operand.vmem [shape: s8[8,2048], index: 4, kind: output, shape index: {1}]
  %s5 = inlined_call_operand.vmem [shape: f32[4,10,1], index: 5, kind: output, shape index: {2}]
  %6 = xla_tuple %s3, %s4, %s5
  %s7 = sld [smem:[#allocation0]]
  $region61: #{abr_lovasz_ce_loss.2} parent=0
    _
  %s9 = ssub.s32 1, %s7
  %s10 = scalar_select 0, %s9, %s7
  loop: start=0, step=1, limit=6
  $region2: #{abr_lovasz_ce_loss.2} parent=0 // loop_pre_header
    _
  $region3: #{abr_lovasz_ce_loss.2} parent=0 // loop_header
    %s12 = sphi 0, %s16
    %p13 = scmp.ge.s32.totalorder %s12, 6
    %s22 = sphi 0, %s24
    %s25 = sphi 0, %s22
    %s26 = sphi 0, %s25
    %s42 = sphi 0, %s26
    %s48 = sphi 0, %s50
    %s51 = sphi 0, %s48
    %s52 = sphi 0, %s51
    %s68 = sphi 0, %s52
    %s74 = sphi 0, %s76
    %s77 = sphi 0, %s74
    %s78 = sphi 0, %s77
    %s94 = sphi 0, %s78
    %s100 = sphi 0, %s102
    %s103 = sphi 0, %s100
    %s104 = sphi 0, %s103
    %s120 = sphi 0, %s104
    %s126 = sphi 0, %s128
    %s129 = sphi 0, %s126
    %s130 = sphi 0, %s129
    %s146 = sphi 0, %s130
    %s152 = sphi 0, %s154
    %s155 = sphi 0, %s152
    %s156 = sphi 0, %s155
    %s172 = sphi 0, %s156
  $region4: #{abr_lovasz_ce_loss.2} parent=0 // loop_header_branch
    %15 = sbr.rel (%p13) target = $region8
  $region5: #{abr_lovasz_ce_loss.2} parent=0 // loop_body
    %s17 = ssub.s32 %s12, 1
    %s18 = ssub.s32 %s12, 2
    %s19 = sadd.s32 %s12, 1
    %s20 = ssub.s32 %s12, %s19
    %p21 = scmp.eq.s32.totalorder %s20, 0
    %s23 = sadd.s32 %s22, 1
    %s24 = scalar_select %p21, %s22, %s23
    %p27 = pneg %p21
    %p28 = scmp.eq.s32.totalorder %s12, 3
    %p29 = por %p27, %p28
    %p30 = scmp.ne.s32.totalorder %s22, %s25
    %p31 = scmp.eq.s32.totalorder %s12, 0
    %p32 = por %p30, %p31
    %p33 = scmp.ne.s32.totalorder %s22, %s25
    %p34 = scmp.eq.s32.totalorder %s17, 3
    %p35 = por %p33, %p34
    %p36 = scmp.ne.s32.totalorder %s25, %s26
    %p37 = scmp.eq.s32.totalorder %s17, 0
    %p38 = por %p36, %p37
    %p39 = scmp.ne.s32.totalorder %s25, %s26
    %p40 = scmp.eq.s32.totalorder %s18, 3
    %p41 = por %p39, %p40
    %p43 = scmp.ne.s32.totalorder %s26, %s42
    %p44 = scmp.eq.s32.totalorder %s18, 0
    %p45 = por %p43, %p44
    %s46 = ssub.s32 %s12, %s19
    %p47 = scmp.eq.s32.totalorder %s46, 0
    %s49 = sadd.s32 %s48, 1
    %s50 = scalar_select %p47, %s48, %s49
    %p53 = pneg %p47
    %p54 = scmp.eq.s32.totalorder %s12, 3
    %p55 = por %p53, %p54
    %p56 = scmp.ne.s32.totalorder %s48, %s51
    %p57 = scmp.eq.s32.totalorder %s12, 0
    %p58 = por %p56, %p57
    %p59 = scmp.ne.s32.totalorder %s48, %s51
    %p60 = scmp.eq.s32.totalorder %s17, 3
    %p61 = por %p59, %p60
    %p62 = scmp.ne.s32.totalorder %s51, %s52
    %p63 = scmp.eq.s32.totalorder %s17, 0
    %p64 = por %p62, %p63
    %p65 = scmp.ne.s32.totalorder %s51, %s52
    %p66 = scmp.eq.s32.totalorder %s18, 3
    %p67 = por %p65, %p66
    %p69 = scmp.ne.s32.totalorder %s52, %s68
    %p70 = scmp.eq.s32.totalorder %s18, 0
    %p71 = por %p69, %p70
    %s72 = ssub.s32 %s12, %s19
    %p73 = scmp.eq.s32.totalorder %s72, 0
    %s75 = sadd.s32 %s74, 1
    %s76 = scalar_select %p73, %s74, %s75
    %p79 = pneg %p73
    %p80 = scmp.eq.s32.totalorder %s12, 3
    %p81 = por %p79, %p80
    %p82 = scmp.ne.s32.totalorder %s74, %s77
    %p83 = scmp.eq.s32.totalorder %s12, 0
    %p84 = por %p82, %p83
    %p85 = scmp.ne.s32.totalorder %s74, %s77
    %p86 = scmp.eq.s32.totalorder %s17, 3
    %p87 = por %p85, %p86
    %p88 = scmp.ne.s32.totalorder %s77, %s78
    %p89 = scmp.eq.s32.totalorder %s17, 0
    %p90 = por %p88, %p89
    %p91 = scmp.ne.s32.totalorder %s77, %s78
    %p92 = scmp.eq.s32.totalorder %s18, 3
    %p93 = por %p91, %p92
    %p95 = scmp.ne.s32.totalorder %s78, %s94
    %p96 = scmp.eq.s32.totalorder %s18, 0
    %p97 = por %p95, %p96
    %s98 = ssub.s32 %s12, %s19
    %p99 = scmp.eq.s32.totalorder %s98, 0
    %s101 = sadd.s32 %s100, 1
    %s102 = scalar_select %p99, %s100, %s101
    %p105 = pneg %p99
    %p106 = scmp.eq.s32.totalorder %s12, 3
    %p107 = por %p105, %p106
    %p108 = scmp.ne.s32.totalorder %s100, %s103
    %p109 = scmp.eq.s32.totalorder %s12, 0
    %p110 = por %p108, %p109
    %p111 = scmp.ne.s32.totalorder %s100, %s103
    %p112 = scmp.eq.s32.totalorder %s17, 3
    %p113 = por %p111, %p112
    %p114 = scmp.ne.s32.totalorder %s103, %s104
    %p115 = scmp.eq.s32.totalorder %s17, 0
    %p116 = por %p114, %p115
    %p117 = scmp.ne.s32.totalorder %s103, %s104
    %p118 = scmp.eq.s32.totalorder %s18, 3
    %p119 = por %p117, %p118
    %p121 = scmp.ne.s32.totalorder %s104, %s120
    %p122 = scmp.eq.s32.totalorder %s18, 0
    %p123 = por %p121, %p122
    %s124 = ssub.s32 %s12, %s19
    %p125 = scmp.eq.s32.totalorder %s124, 0
    %s127 = sadd.s32 %s126, 1
    %s128 = scalar_select %p125, %s126, %s127
    %p131 = pneg %p125
    %p132 = scmp.eq.s32.totalorder %s12, 3
    %p133 = por %p131, %p132
    %p134 = scmp.ne.s32.totalorder %s126, %s129
    %p135 = scmp.eq.s32.totalorder %s12, 0
    %p136 = por %p134, %p135
    %p137 = scmp.ne.s32.totalorder %s126, %s129
    %p138 = scmp.eq.s32.totalorder %s17, 3
    %p139 = por %p137, %p138
    %p140 = scmp.ne.s32.totalorder %s129, %s130
    %p141 = scmp.eq.s32.totalorder %s17, 0
    %p142 = por %p140, %p141
    %p143 = scmp.ne.s32.totalorder %s129, %s130
    %p144 = scmp.eq.s32.totalorder %s18, 3
    %p145 = por %p143, %p144
    %p147 = scmp.ne.s32.totalorder %s130, %s146
    %p148 = scmp.eq.s32.totalorder %s18, 0
    %p149 = por %p147, %p148
    %s150 = ssub.s32 %s12, %s19
    %p151 = scmp.eq.s32.totalorder %s150, 0
    %s153 = sadd.s32 %s152, 1
    %s154 = scalar_select %p151, %s152, %s153
    %p157 = pneg %p151
    %p158 = scmp.eq.s32.totalorder %s12, 3
    %p159 = por %p157, %p158
    %p160 = scmp.ne.s32.totalorder %s152, %s155
    %p161 = scmp.eq.s32.totalorder %s12, 0
    %p162 = por %p160, %p161
    %p163 = scmp.ne.s32.totalorder %s152, %s155
    %p164 = scmp.eq.s32.totalorder %s17, 3
    %p165 = por %p163, %p164
    %p166 = scmp.ne.s32.totalorder %s155, %s156
    %p167 = scmp.eq.s32.totalorder %s17, 0
    %p168 = por %p166, %p167
    %p169 = scmp.ne.s32.totalorder %s155, %s156
    %p170 = scmp.eq.s32.totalorder %s18, 3
    %p171 = por %p169, %p170
    %p173 = scmp.ne.s32.totalorder %s156, %s172
    %p174 = scmp.eq.s32.totalorder %s18, 0
    %p175 = por %p173, %p174
    %p176 = scmp.le.s32.totalorder 1, %s12
    %p177 = scmp.lt.s32.totalorder %s12, 5
    %p178 = pnand %p176, %p177
    %p179 = pneg %p178
    // Predicated region
    $region9: #{abr_lovasz_ce_loss.2} parent=5 // pred_check
      _
    $region10: #{abr_lovasz_ce_loss.2} parent=5 // pred_check_branch
      %181 = sbr.rel (%p178) target = $region12
    $region11: #{abr_lovasz_ce_loss.2} parent=5 // pred_region
      %s182 = ssub.s32 %s12, 1
    $region12: #{abr_lovasz_ce_loss.2} parent=5 // pred_fallthru
      _
    %p183 = scmp.lt.s32.totalorder %s12, 4
    // Predicated region
    $region13: #{abr_lovasz_ce_loss.2} parent=5 // pred_check
      %p184 = pneg %p183
    $region14: #{abr_lovasz_ce_loss.2} parent=5 // pred_check_branch
      %186 = sbr.rel (%p184) target = $region16
    $region15: #{abr_lovasz_ce_loss.2} parent=5 // pred_region
      // Predicated region
      $region17: #{abr_lovasz_ce_loss.2} parent=15 // pred_check
        %p187 = pneg %p32
      $region18: #{abr_lovasz_ce_loss.2} parent=15 // pred_check_branch
        %189 = sbr.rel (%p187) target = $region20
      $region19: #{abr_lovasz_ce_loss.2} parent=15 // pred_region
        %s190 = smul.u32 4, %s12
        %p191 = scmp.lt.s32.totalorder %s190, 15
        %s192 = scalar_select %p191, %s190, 15
        %s193 = smul.addr %s192, 8
        %s194 = scalar_lea.vmem %s0, %s193
        %s195 = smul.u32 4, %s12
      $region20: #{abr_lovasz_ce_loss.2} parent=15 // pred_fallthru
        _
      // Predicated region
      $region21: #{abr_lovasz_ce_loss.2} parent=15 // pred_check
        %p196 = pneg %p58
      $region22: #{abr_lovasz_ce_loss.2} parent=15 // pred_check_branch
        %198 = sbr.rel (%p196) target = $region24
      $region23: #{abr_lovasz_ce_loss.2} parent=15 // pred_region
        %s199 = smul.u32 4, %s12
        %p200 = scmp.lt.s32.totalorder %s199, 15
        %s201 = scalar_select %p200, %s199, 15
        %s202 = smul.addr %s201, 8
        %s203 = scalar_lea.vmem %s1, %s202
        %s204 = smul.u32 4, %s12
      $region24: #{abr_lovasz_ce_loss.2} parent=15 // pred_fallthru
        _
      // Predicated region
      $region25: #{abr_lovasz_ce_loss.2} parent=15 // pred_check
        %p205 = pneg %p84
      $region26: #{abr_lovasz_ce_loss.2} parent=15 // pred_check_branch
        %207 = sbr.rel (%p205) target = $region28
      $region27: #{abr_lovasz_ce_loss.2} parent=15 // pred_region
        %s208 = smul.u32 4, %s12
        %p209 = scmp.lt.s32.totalorder %s208, 15
        %s210 = scalar_select %p209, %s208, 15
        %s211 = scalar_lea.vmem %s2, %s210
        %s212 = smul.u32 4, %s12
      $region28: #{abr_lovasz_ce_loss.2} parent=15 // pred_fallthru
        _
    $region16: #{abr_lovasz_ce_loss.2} parent=5 // pred_fallthru
      _
    %p213 = scmp.le.s32.totalorder 1, %s12
    %p214 = scmp.lt.s32.totalorder %s12, 5
    %p215 = pnand %p213, %p214
    %p216 = pneg %p215
    // Predicated region
    $region29: #{abr_lovasz_ce_loss.2} parent=5 // pred_check
      _
    $region30: #{abr_lovasz_ce_loss.2} parent=5 // pred_check_branch
      %218 = sbr.rel (%p215) target = $region32
    $region31: #{abr_lovasz_ce_loss.2} parent=5 // pred_region
      %s219 = ssub.s32 %s12, 1
      %s220 = smul.u32 4, %s17
      %p221 = scmp.lt.s32.totalorder %s220, 15
      %s222 = scalar_select %p221, %s220, 15
      %s223 = smul.addr %s222, 8
      %s224 = scalar_lea.vmem %s0, %s223
      %p225 = pneg %p38
      %p226 = pneg %p35
      %s227 = smul.u32 4, %s17
      %p228 = scmp.lt.s32.totalorder %s227, 15
      %s229 = scalar_select %p228, %s227, 15
      %s230 = smul.addr %s229, 8
      %s231 = scalar_lea.vmem %s1, %s230
      %p232 = pneg %p64
      %p233 = pneg %p61
      %s234 = smul.u32 4, %s17
      %p235 = scmp.lt.s32.totalorder %s234, 15
      %s236 = scalar_select %p235, %s234, 15
      %s237 = scalar_lea.vmem %s2, %s236
      %p238 = pneg %p90
      %p239 = pneg %p87
      %p240 = pneg %p116
      %p241 = pneg %p113
      %s242 = smul.u32 4, %s17
      %p243 = scmp.lt.s32.totalorder %s242, 15
      %s244 = scalar_select %p243, %s242, 15
      %s245 = smul.addr %s244, 8
      %s246 = scalar_lea.vmem %s3, %s245
      %p247 = pneg %p142
      %p248 = pneg %p139
      %s249 = smul.u32 4, %s17
      %p250 = scmp.lt.s32.totalorder %s249, 15
      %s251 = scalar_select %p250, %s249, 15
      %s252 = smul.addr %s251, 2
      %s253 = scalar_lea.vmem %s4, %s252
      %p254 = pneg %p168
      %p255 = pneg %p165
      %p256 = scmp.lt.s32.totalorder %s17, 3
      %s257 = scalar_select %p256, %s17, 3
      %s258 = smul.addr %s257, 2
      %s259 = smul.addr %s258, 8
      %s260 = scalar_lea.vmem %s5, %s259
      %s261 = smul.u32 4, %s17
      %p262 = scmp.lt.s32.totalorder %s261, 15
      %s263 = scalar_select %p262, %s261, 15
      %s264 = smul.addr %s263, 8
      %s265 = scalar_lea.vmem %s0, %s264
      %s266 = smul.u32 4, %s17
      %s267 = smul.u32 4, %s17
      %p268 = scmp.lt.s32.totalorder %s267, 15
      %s269 = scalar_select %p268, %s267, 15
      %s270 = smul.addr %s269, 8
      %s271 = scalar_lea.vmem %s1, %s270
      %s272 = smul.u32 4, %s17
      %s273 = smul.u32 4, %s17
      %p274 = scmp.lt.s32.totalorder %s273, 15
      %s275 = scalar_select %p274, %s273, 15
      %s276 = scalar_lea.vmem %s2, %s275
      %s277 = smul.u32 4, %s17
      %s278 = smul.u32 4, %s17
      %p279 = scmp.lt.s32.totalorder %s278, 15
      %s280 = scalar_select %p279, %s278, 15
      %s281 = smul.addr %s280, 8
      %s282 = scalar_lea.vmem %s3, %s281
      %s283 = smul.u32 4, %s17
      %s284 = smul.u32 4, %s17
      %p285 = scmp.lt.s32.totalorder %s284, 15
      %s286 = scalar_select %p285, %s284, 15
      %s287 = smul.addr %s286, 2
      %s288 = scalar_lea.vmem %s4, %s287
      %s289 = smul.u32 4, %s17
      %p290 = scmp.lt.s32.totalorder %s17, 3
      %s291 = scalar_select %p290, %s17, 3
      %s292 = smul.addr %s291, 2
      %s293 = smul.addr %s292, 8
      %s294 = scalar_lea.vmem %s5, %s293
      %v295 = vld [vmem:[%s265] sm:$0xff]
      %v296 = vld [vmem:[%s265 + $0x8] sm:$0xff]
      %v297 = vld [vmem:[%s265 + $0x10] sm:$0xff]
      %v298 = vld [vmem:[%s265 + $0x18] sm:$0xff]
      %v299 = vld [vmem:[%s276] sm:$0xf]
      %vm300 = vcmp.ge.s32.totalorder %v299, 0
      %v301 = vsel %vm300, 1, 0
      %v302 = vcvt.s32.f32 %v301
      %v303 = vlaneseq
      %v304 = vshrl.u32 %v303, 7
      %v305 = vlaneseq
      %v306 = vshrl.u32 %v305, 7
      %v307 = vsub.s32 0, %v306
      %v308 = vrot.slane %v299, %v307
      %v309 = vlaneseq
      %v310 = vshrl.u32 %v309, 7
      %v311 = vsub.s32 1, %v310
      %v312 = vrot.slane %v299, %v311
      %v313 = vlaneseq
      %v314 = vshrl.u32 %v313, 7
      %v315 = vsub.s32 2, %v314
      %v316 = vrot.slane %v299, %v315
      %v317 = vlaneseq
      %v318 = vshrl.u32 %v317, 7
      %v319 = vsub.s32 3, %v318
      %v320 = vrot.slane %v299, %v319
      %vm321 = vcmp.eq.s32.totalorder %v304, %v308
      %vm322 = vcmp.eq.s32.totalorder %v304, %v312
      %vm323 = vcmp.eq.s32.totalorder %v304, %v316
      %vm324 = vcmp.eq.s32.totalorder %v304, %v320
      %v325 = vsel %vm321, 1, 0
      %v326 = vsel %vm322, 1, 0
      %v327 = vsel %vm323, 1, 0
      %v328 = vsel %vm324, 1, 0
      %v329 = vcvt.s32.f32 %v325
      %v330 = vcvt.s32.f32 %v326
      %v331 = vcvt.s32.f32 %v327
      %v332 = vcvt.s32.f32 %v328
      %v333 = vrot.slane %v295, 4
      %v334 = vmax.f32 %v295, %v333
      %v335 = vrot.slane %v334, 2
      %v336 = vmax.f32 %v334, %v335
      %v337 = vrot.slane %v336, 1
      %v338 = vmax.f32 %v336, %v337
      %v339 = vrot.slane %v296, 4
      %v340 = vmax.f32 %v296, %v339
      %v341 = vrot.slane %v340, 2
      %v342 = vmax.f32 %v340, %v341
      %v343 = vrot.slane %v342, 1
      %v344 = vmax.f32 %v342, %v343
      %v345 = vrot.slane %v297, 4
      %v346 = vmax.f32 %v297, %v345
      %v347 = vrot.slane %v346, 2
      %v348 = vmax.f32 %v346, %v347
      %v349 = vrot.slane %v348, 1
      %v350 = vmax.f32 %v348, %v349
      %v351 = vrot.slane %v298, 4
      %v352 = vmax.f32 %v298, %v351
      %v353 = vrot.slane %v352, 2
      %v354 = vmax.f32 %v352, %v353
      %v355 = vrot.slane %v354, 1
      %v356 = vmax.f32 %v354, %v355
      %v357 = vsub.f32 %v295, %v338
      %v358 = vsub.f32 %v296, %v344
      %v359 = vsub.f32 %v297, %v350
      %v360 = vsub.f32 %v298, %v356
      %v361 = vmul.f32 %v357, 1.442695
      %v362 = vpow.pop %v361
      %v363 = vmul.f32 %v358, 1.442695
      %v364 = vpow.pop %v363
      %v365 = vmul.f32 %v359, 1.442695
      %v366 = vpow.pop %v365
      %v367 = vmul.f32 %v360, 1.442695
      %v368 = vpow.pop %v367
      %v369 = vrot.slane %v362, 4
      %v370 = vadd.f32 %v362, %v369
      %v371 = vrot.slane %v370, 2
      %v372 = vadd.f32 %v370, %v371
      %v373 = vrot.slane %v372, 1
      %v374 = vadd.f32 %v372, %v373
      %v375 = vrot.slane %v364, 4
      %v376 = vadd.f32 %v364, %v375
      %v377 = vrot.slane %v376, 2
      %v378 = vadd.f32 %v376, %v377
      %v379 = vrot.slane %v378, 1
      %v380 = vadd.f32 %v378, %v379
      %v381 = vrot.slane %v366, 4
      %v382 = vadd.f32 %v366, %v381
      %v383 = vrot.slane %v382, 2
      %v384 = vadd.f32 %v382, %v383
      %v385 = vrot.slane %v384, 1
      %v386 = vadd.f32 %v384, %v385
      %v387 = vrot.slane %v368, 4
      %v388 = vadd.f32 %v368, %v387
      %v389 = vrot.slane %v388, 2
      %v390 = vadd.f32 %v388, %v389
      %v391 = vrot.slane %v390, 1
      %v392 = vadd.f32 %v390, %v391
      %v393 = vrcp.pop %v374
      %v394 = vmul.f32 1.0, %v393
      %v395 = vrcp.pop %v380
      %v396 = vmul.f32 1.0, %v395
      %v397 = vrcp.pop %v386
      %v398 = vmul.f32 1.0, %v397
      %v399 = vrcp.pop %v392
      %v400 = vmul.f32 1.0, %v399
      %v401 = vmul.f32 %v362, %v394
      %v402 = vmul.f32 %v364, %v396
      %v403 = vmul.f32 %v366, %v398
      %v404 = vmul.f32 %v368, %v400
      %v405 = vsub.f32 %v329, %v401
      %v406 = vsub.f32 %v330, %v402
      %v407 = vsub.f32 %v331, %v403
      %v408 = vsub.f32 %v332, %v404
      %v409 = vand.u32 2147483647, %v405
      %v410 = vand.u32 2147483647, %v406
      %v411 = vand.u32 2147483647, %v407
      %v412 = vand.u32 2147483647, %v408
      %v413 = vsub.f32 0.0, %v409
      %v414 = vsub.f32 0.0, %v410
      %v415 = vsub.f32 0.0, %v411
      %v416 = vsub.f32 0.0, %v412
      %v418 = vlaneseq
      %v419 = vshrl.u32 %v418, 7
      %v420 = vsub.s32 0, %v419
      %v421 = vrot.slane %v302, %v420
      %v422 = vlaneseq
      %v423 = vshrl.u32 %v422, 7
      %v424 = vsub.s32 1, %v423
      %v425 = vrot.slane %v302, %v424
      %v426 = vlaneseq
      %v427 = vshrl.u32 %v426, 7
      %v428 = vsub.s32 2, %v427
      %v429 = vrot.slane %v302, %v428
      %v430 = vlaneseq
      %v431 = vshrl.u32 %v430, 7
      %v432 = vsub.s32 3, %v431
      %v433 = vrot.slane %v302, %v432
      %v438 = vmul.f32 %v413, %v421
      %v439 = vmul.f32 %v414, %v425
      %v440 = vmul.f32 %v415, %v429
      %v441 = vmul.f32 %v416, %v433
      %442 = vst [vmem:[%s282] sm:$0xff] %v438
      %443 = vst [vmem:[%s282 + $0x8] sm:$0xff] %v439
      %444 = vst [vmem:[%s282 + $0x10] sm:$0xff] %v440
      %445 = vst [vmem:[%s282 + $0x18] sm:$0xff] %v441
      %v446 = vtrunc.f32 %v329
      %v447 = vtrunc.f32 %v330
      %v448 = vtrunc.f32 %v331
      %v449 = vtrunc.f32 %v332
      %v450 = vpack.c.f32.eXmY %v446, %v446, 312
      %v454 = vpack.c.b8 %v450, %v450
      %v456 = vpack.c.f32.eXmY %v447, %v447, 312
      %v460 = vpack.c.b8 %v456, %v456
      %v462 = vpack.c.f32.eXmY %v448, %v448, 312
      %v466 = vpack.c.b8 %v462, %v462
      %v468 = vpack.c.f32.eXmY %v449, %v449, 312
      %v472 = vpack.c.b8 %v468, %v468
      %v474 = vunpack.c.0.s8 %v454
      %v475 = vunpack.c.0.s8 %v460
      %v476 = vunpack.c.0.s8 %v466
      %v477 = vunpack.c.0.s8 %v472
      %v478 = vpack.c.b16 %v475, %v474
      %v479 = vpack.c.b16 %v477, %v476
      %v480 = vpack.c.b8 %v479, %v478
      %481 = vst [vmem:[%s288] sm:$0xff] %v480
      %v482 = vadd.f32 %v329, %v330
      %v483 = vadd.f32 %v482, %v331
      %v484 = vadd.f32 %v483, %v332
      %485 = vadd.xlane.f32.xlu0 %v484
      %v486 = vpop.xlane.xlu0 %485
      %v487 = vlog2.pop %v374
      %v488 = vmul.f32 %v487, 0.6931472
      %v489 = vlog2.pop %v380
      %v490 = vmul.f32 %v489, 0.6931472
      %v491 = vlog2.pop %v386
      %v492 = vmul.f32 %v491, 0.6931472
      %v493 = vlog2.pop %v392
      %v494 = vmul.f32 %v493, 0.6931472
      %v495 = vadd.f32 %v488, %v338
      %v496 = vadd.f32 %v490, %v344
      %v497 = vadd.f32 %v492, %v350
      %v498 = vadd.f32 %v494, %v356
      %v499 = vmul.f32 %v295, %v329
      %v500 = vmul.f32 %v296, %v330
      %v501 = vmul.f32 %v297, %v331
      %v502 = vmul.f32 %v298, %v332
      %v503 = vrot.slane %v499, 4
      %v504 = vadd.f32 %v499, %v503
      %v505 = vrot.slane %v504, 2
      %v506 = vadd.f32 %v504, %v505
      %v507 = vrot.slane %v506, 1
      %v508 = vadd.f32 %v506, %v507
      %v509 = vrot.slane %v500, 4
      %v510 = vadd.f32 %v500, %v509
      %v511 = vrot.slane %v510, 2
      %v512 = vadd.f32 %v510, %v511
      %v513 = vrot.slane %v512, 1
      %v514 = vadd.f32 %v512, %v513
      %v515 = vrot.slane %v501, 4
      %v516 = vadd.f32 %v501, %v515
      %v517 = vrot.slane %v516, 2
      %v518 = vadd.f32 %v516, %v517
      %v519 = vrot.slane %v518, 1
      %v520 = vadd.f32 %v518, %v519
      %v521 = vrot.slane %v502, 4
      %v522 = vadd.f32 %v502, %v521
      %v523 = vrot.slane %v522, 2
      %v524 = vadd.f32 %v522, %v523
      %v525 = vrot.slane %v524, 1
      %v526 = vadd.f32 %v524, %v525
      %v527 = vsub.f32 %v495, %v508
      %v528 = vsub.f32 %v496, %v514
      %v529 = vsub.f32 %v497, %v520
      %v530 = vsub.f32 %v498, %v526
      %v531 = vmul.f32 %v527, %v421
      %v532 = vmul.f32 %v528, %v425
      %v533 = vmul.f32 %v529, %v429
      %v534 = vmul.f32 %v530, %v433
      %vm535 = vcmask 1040384
      %v536 = vsel %vm535, %v531, 0.0
      %v537 = vsel %vm535, %v532, 0.0
      %v538 = vadd.f32 %v536, %v537
      %v539 = vsel %vm535, %v533, 0.0
      %v540 = vadd.f32 %v538, %v539
      %v541 = vsel %vm535, %v534, 0.0
      %v542 = vadd.f32 %v540, %v541
      %543 = vadd.xlane.f32.xlu0 %v542
      %v544 = vpop.xlane.xlu0 %543
      %v545 = vld [vmem:[%s271] sm:$0xff]
      %v546 = vld [vmem:[%s271 + $0x8] sm:$0xff]
      %v547 = vld [vmem:[%s271 + $0x10] sm:$0xff]
      %v548 = vld [vmem:[%s271 + $0x18] sm:$0xff]
      %v549 = vrot.slane %v545, 4
      %v550 = vmax.f32 %v545, %v549
      %v551 = vrot.slane %v550, 2
      %v552 = vmax.f32 %v550, %v551
      %v553 = vrot.slane %v552, 1
      %v554 = vmax.f32 %v552, %v553
      %v555 = vrot.slane %v546, 4
      %v556 = vmax.f32 %v546, %v555
      %v557 = vrot.slane %v556, 2
      %v558 = vmax.f32 %v556, %v557
      %v559 = vrot.slane %v558, 1
      %v560 = vmax.f32 %v558, %v559
      %v561 = vrot.slane %v547, 4
      %v562 = vmax.f32 %v547, %v561
      %v563 = vrot.slane %v562, 2
      %v564 = vmax.f32 %v562, %v563
      %v565 = vrot.slane %v564, 1
      %v566 = vmax.f32 %v564, %v565
      %v567 = vrot.slane %v548, 4
      %v568 = vmax.f32 %v548, %v567
      %v569 = vrot.slane %v568, 2
      %v570 = vmax.f32 %v568, %v569
      %v571 = vrot.slane %v570, 1
      %v572 = vmax.f32 %v570, %v571
      %v573 = vsub.f32 %v545, %v554
      %v574 = vsub.f32 %v546, %v560
      %v575 = vsub.f32 %v547, %v566
      %v576 = vsub.f32 %v548, %v572
      %v577 = vmul.f32 %v573, 1.442695
      %v578 = vpow.pop %v577
      %v579 = vmul.f32 %v574, 1.442695
      %v580 = vpow.pop %v579
      %v581 = vmul.f32 %v575, 1.442695
      %v582 = vpow.pop %v581
      %v583 = vmul.f32 %v576, 1.442695
      %v584 = vpow.pop %v583
      %v585 = vrot.slane %v578, 4
      %v586 = vadd.f32 %v578, %v585
      %v587 = vrot.slane %v586, 2
      %v588 = vadd.f32 %v586, %v587
      %v589 = vrot.slane %v588, 1
      %v590 = vadd.f32 %v588, %v589
      %v591 = vrot.slane %v580, 4
      %v592 = vadd.f32 %v580, %v591
      %v593 = vrot.slane %v592, 2
      %v594 = vadd.f32 %v592, %v593
      %v595 = vrot.slane %v594, 1
      %v596 = vadd.f32 %v594, %v595
      %v597 = vrot.slane %v582, 4
      %v598 = vadd.f32 %v582, %v597
      %v599 = vrot.slane %v598, 2
      %v600 = vadd.f32 %v598, %v599
      %v601 = vrot.slane %v600, 1
      %v602 = vadd.f32 %v600, %v601
      %v603 = vrot.slane %v584, 4
      %v604 = vadd.f32 %v584, %v603
      %v605 = vrot.slane %v604, 2
      %v606 = vadd.f32 %v604, %v605
      %v607 = vrot.slane %v606, 1
      %v608 = vadd.f32 %v606, %v607
      %v609 = vlog2.pop %v590
      %v610 = vmul.f32 %v609, 0.6931472
      %v611 = vlog2.pop %v596
      %v612 = vmul.f32 %v611, 0.6931472
      %v613 = vlog2.pop %v602
      %v614 = vmul.f32 %v613, 0.6931472
      %v615 = vlog2.pop %v608
      %v616 = vmul.f32 %v615, 0.6931472
      %v617 = vadd.f32 %v610, %v554
      %v618 = vadd.f32 %v612, %v560
      %v619 = vadd.f32 %v614, %v566
      %v620 = vadd.f32 %v616, %v572
      %v621 = vmul.f32 %v545, %v329
      %v622 = vmul.f32 %v546, %v330
      %v623 = vmul.f32 %v547, %v331
      %v624 = vmul.f32 %v548, %v332
      %v625 = vrot.slane %v621, 4
      %v626 = vadd.f32 %v621, %v625
      %v627 = vrot.slane %v626, 2
      %v628 = vadd.f32 %v626, %v627
      %v629 = vrot.slane %v628, 1
      %v630 = vadd.f32 %v628, %v629
      %v631 = vrot.slane %v622, 4
      %v632 = vadd.f32 %v622, %v631
      %v633 = vrot.slane %v632, 2
      %v634 = vadd.f32 %v632, %v633
      %v635 = vrot.slane %v634, 1
      %v636 = vadd.f32 %v634, %v635
      %v637 = vrot.slane %v623, 4
      %v638 = vadd.f32 %v623, %v637
      %v639 = vrot.slane %v638, 2
      %v640 = vadd.f32 %v638, %v639
      %v641 = vrot.slane %v640, 1
      %v642 = vadd.f32 %v640, %v641
      %v643 = vrot.slane %v624, 4
      %v644 = vadd.f32 %v624, %v643
      %v645 = vrot.slane %v644, 2
      %v646 = vadd.f32 %v644, %v645
      %v647 = vrot.slane %v646, 1
      %v648 = vadd.f32 %v646, %v647
      %v649 = vsub.f32 %v617, %v630
      %v650 = vsub.f32 %v618, %v636
      %v651 = vsub.f32 %v619, %v642
      %v652 = vsub.f32 %v620, %v648
      %v653 = vmul.f32 %v649, %v421
      %v654 = vmul.f32 %v650, %v425
      %v655 = vmul.f32 %v651, %v429
      %v656 = vmul.f32 %v652, %v433
      %v657 = vsel %vm535, %v653, 0.0
      %v658 = vsel %vm535, %v654, 0.0
      %v659 = vadd.f32 %v657, %v658
      %v660 = vsel %vm535, %v655, 0.0
      %v661 = vadd.f32 %v659, %v660
      %v662 = vsel %vm535, %v656, 0.0
      %v663 = vadd.f32 %v661, %v662
      %664 = vadd.xlane.f32.xlu0 %v663
      %v665 = vpop.xlane.xlu0 %664
      %vm666 = vcmask 7168
      %667 = vst.msk [vmem:[%s294] sm:$0xff] %vm666, %v486
      %vm668 = vcmask 0
      %669 = vst.msk [vmem:[%s294 + $0x8] sm:$0x1] %vm668, %v544
      %670 = vst.msk [vmem:[%s294 + $0x9] sm:$0x1] %vm668, %v665
      %s671 = smul.u32 4, %s17
      %p672 = scmp.lt.s32.totalorder %s671, 15
      %s673 = scalar_select %p672, %s671, 15
      %s674 = smul.addr %s673, 8
      %s675 = scalar_lea.vmem %s3, %s674
      %s676 = smul.u32 4, %s17
      %p677 = scmp.lt.s32.totalorder %s676, 15
      %s678 = scalar_select %p677, %s676, 15
      %s679 = smul.addr %s678, 2
      %s680 = scalar_lea.vmem %s4, %s679
      %p681 = scmp.lt.s32.totalorder %s17, 3
      %s682 = scalar_select %p681, %s17, 3
      %s683 = smul.addr %s682, 2
      %s684 = smul.addr %s683, 8
      %s685 = scalar_lea.vmem %s5, %s684
      // Predicated region
      $region33: #{abr_lovasz_ce_loss.2} parent=31 // pred_check
        %p686 = pneg %p113
      $region34: #{abr_lovasz_ce_loss.2} parent=31 // pred_check_branch
        %688 = sbr.rel (%p686) target = $region36
      $region35: #{abr_lovasz_ce_loss.2} parent=31 // pred_region
        %s689 = smul.u32 4, %s17
      $region36: #{abr_lovasz_ce_loss.2} parent=31 // pred_fallthru
        _
      // Predicated region
      $region37: #{abr_lovasz_ce_loss.2} parent=31 // pred_check
        %p690 = pneg %p139
      $region38: #{abr_lovasz_ce_loss.2} parent=31 // pred_check_branch
        %692 = sbr.rel (%p690) target = $region40
      $region39: #{abr_lovasz_ce_loss.2} parent=31 // pred_region
        %s693 = smul.u32 4, %s17
      $region40: #{abr_lovasz_ce_loss.2} parent=31 // pred_fallthru
        _
      // Predicated region
      $region41: #{abr_lovasz_ce_loss.2} parent=31 // pred_check
        %p694 = pneg %p165
      $region42: #{abr_lovasz_ce_loss.2} parent=31 // pred_check_branch
        %696 = sbr.rel (%p694) target = $region44
      $region43: #{abr_lovasz_ce_loss.2} parent=31 // pred_region
        _
      $region44: #{abr_lovasz_ce_loss.2} parent=31 // pred_fallthru
        _
    $region32: #{abr_lovasz_ce_loss.2} parent=5 // pred_fallthru
      _
    %p697 = scmp.le.s32.totalorder 2, %s12
    // Predicated region
    $region45: #{abr_lovasz_ce_loss.2} parent=5 // pred_check
      %p698 = pneg %p697
    $region46: #{abr_lovasz_ce_loss.2} parent=5 // pred_check_branch
      %700 = sbr.rel (%p698) target = $region48
    $region47: #{abr_lovasz_ce_loss.2} parent=5 // pred_region
      %s701 = ssub.s32 %s12, 2
      // Predicated region
      $region49: #{abr_lovasz_ce_loss.2} parent=47 // pred_check
        %p702 = pneg %p119
      $region50: #{abr_lovasz_ce_loss.2} parent=47 // pred_check_branch
        %704 = sbr.rel (%p702) target = $region52
      $region51: #{abr_lovasz_ce_loss.2} parent=47 // pred_region
        %s705 = smul.u32 4, %s18
        %p706 = scmp.lt.s32.totalorder %s705, 15
        %s707 = scalar_select %p706, %s705, 15
        %s708 = smul.addr %s707, 8
        %s709 = scalar_lea.vmem %s3, %s708
      $region52: #{abr_lovasz_ce_loss.2} parent=47 // pred_fallthru
        _
      // Predicated region
      $region53: #{abr_lovasz_ce_loss.2} parent=47 // pred_check
        %p710 = pneg %p145
      $region54: #{abr_lovasz_ce_loss.2} parent=47 // pred_check_branch
        %712 = sbr.rel (%p710) target = $region56
      $region55: #{abr_lovasz_ce_loss.2} parent=47 // pred_region
        %s713 = smul.u32 4, %s18
        %p714 = scmp.lt.s32.totalorder %s713, 15
        %s715 = scalar_select %p714, %s713, 15
        %s716 = smul.addr %s715, 2
        %s717 = scalar_lea.vmem %s4, %s716
      $region56: #{abr_lovasz_ce_loss.2} parent=47 // pred_fallthru
        _
      // Predicated region
      $region57: #{abr_lovasz_ce_loss.2} parent=47 // pred_check
        %p718 = pneg %p171
      $region58: #{abr_lovasz_ce_loss.2} parent=47 // pred_check_branch
        %720 = sbr.rel (%p718) target = $region60
      $region59: #{abr_lovasz_ce_loss.2} parent=47 // pred_region
        %p721 = scmp.lt.s32.totalorder %s18, 3
        %s722 = scalar_select %p721, %s18, 3
        %s723 = smul.addr %s722, 2
        %s724 = smul.addr %s723, 8
        %s725 = scalar_lea.vmem %s5, %s724
      $region60: #{abr_lovasz_ce_loss.2} parent=47 // pred_fallthru
        _
    $region48: #{abr_lovasz_ce_loss.2} parent=5 // pred_fallthru
      _
  $region6: #{abr_lovasz_ce_loss.2} parent=0 // loop_footer
    %s16 = sadd.s32 1, %s12
  $region7: #{abr_lovasz_ce_loss.2} parent=0 // loop_footer_branch
    %11 = sbr.rel target = $region3
  $region8: #{abr_lovasz_ce_loss.2} parent=0 // loop_exit
    _

// kernel: abr_lovasz_ce_loss.3
$region0: #{abr_lovasz_ce_loss.3}
  #allocation0 [shape = 'u32[]', space=smem, size = 0x4, offset = 0x4, fixed_abs, tag = 'smem constant byte address 0x4 - core index']
  #allocation1 [shape = 'u32[144,128]{1,0:T(1,128)}', space=vmem, size = 0x12000, scoped, tag = 'internal scratch']
  #allocation2 [shape = 'f32[8,1]{1,0:T(8,128)}', space=vmem, size = 0x1000, scoped, tag = 'scratch operand']
  #allocation3 [shape = 'f32[8,1]{1,0:T(8,128)}', space=vmem, size = 0x1000, scoped, tag = 'scratch operand']
  %s0 = inlined_call_operand.vmem [shape: f32[8,2048], index: 0, kind: input, shape index: {}]
  %s1 = inlined_call_operand.vmem [shape: s8[8,2048], index: 1, kind: input, shape index: {}]
  %s2 = inlined_call_operand.vmem [shape: f32[8,1], index: 2, kind: input, shape index: {}]
  %s3 = inlined_call_operand.vmem [shape: f32[8,1], index: 3, kind: output, shape index: {}]
  %s4 = sld [smem:[#allocation0]]
  $region49: #{abr_lovasz_ce_loss.3} parent=0
    _
  %s6 = ssub.s32 1, %s4
  %s7 = scalar_select 0, %s6, %s4
  loop: start=0, step=1, limit=6
  $region2: #{abr_lovasz_ce_loss.3} parent=0 // loop_pre_header
    _
  $region3: #{abr_lovasz_ce_loss.3} parent=0 // loop_header
    %s9 = sphi 0, %s13
    %p10 = scmp.ge.s32.totalorder %s9, 6
    %s16 = sphi 0, %s28
    %s17 = sphi 0, %s24
    %s18 = sphi 0, %s16
    %s19 = sphi 0, %s17
    %s20 = sphi 0, %s18
    %s21 = sphi 0, %s19
    %s33 = sphi 0, %s35
    %s36 = sphi 0, %s33
    %s37 = sphi 0, %s36
    %s53 = sphi 0, %s37
    %s61 = sphi 0, %s63
    %s64 = sphi 0, %s61
    %s65 = sphi 0, %s64
    %s81 = sphi 0, %s65
    %s87 = sphi 0, %s89
    %s90 = sphi 0, %s87
    %s91 = sphi 0, %s90
    %s107 = sphi 0, %s91
    %s113 = sphi 0, %s115
    %s116 = sphi 0, %s113
    %s117 = sphi 0, %s116
    %s133 = sphi 0, %s117
  $region4: #{abr_lovasz_ce_loss.3} parent=0 // loop_header_branch
    %12 = sbr.rel (%p10) target = $region8
  $region5: #{abr_lovasz_ce_loss.3} parent=0 // loop_body
    %s14 = ssub.s32 %s9, 1
    %s15 = ssub.s32 %s9, 2
    %s22 = sadd.s32 1, %s17
    %p23 = scmp.ge.s32.totalorder %s22, 4
    %s24 = scalar_select %p23, 0, %s22
    %s25 = sadd.s32 1, %s16
    %s26 = scalar_select %p23, %s25, %s16
    %p27 = scmp.ge.s32.totalorder %s26, 1
    %s28 = scalar_select %p27, 0, %s26
    %s29 = ssub.s32 %s16, %s28
    %s30 = ssub.s32 %s17, %s24
    %s31 = sor.u32 %s29, %s30
    %p32 = scmp.eq.s32.totalorder %s31, 0
    %s34 = sadd.s32 %s33, 1
    %s35 = scalar_select %p32, %s33, %s34
    %p38 = pneg %p32
    %p39 = scmp.eq.s32.totalorder %s9, 3
    %p40 = por %p38, %p39
    %p41 = scmp.ne.s32.totalorder %s33, %s36
    %p42 = scmp.eq.s32.totalorder %s9, 0
    %p43 = por %p41, %p42
    %p44 = scmp.ne.s32.totalorder %s33, %s36
    %p45 = scmp.eq.s32.totalorder %s14, 3
    %p46 = por %p44, %p45
    %p47 = scmp.ne.s32.totalorder %s36, %s37
    %p48 = scmp.eq.s32.totalorder %s14, 0
    %p49 = por %p47, %p48
    %p50 = scmp.ne.s32.totalorder %s36, %s37
    %p51 = scmp.eq.s32.totalorder %s15, 3
    %p52 = por %p50, %p51
    %p54 = scmp.ne.s32.totalorder %s37, %s53
    %p55 = scmp.eq.s32.totalorder %s15, 0
    %p56 = por %p54, %p55
    %s57 = ssub.s32 %s16, %s28
    %s58 = ssub.s32 %s17, %s24
    %s59 = sor.u32 %s57, %s58
    %p60 = scmp.eq.s32.totalorder %s59, 0
    %s62 = sadd.s32 %s61, 1
    %s63 = scalar_select %p60, %s61, %s62
    %p66 = pneg %p60
    %p67 = scmp.eq.s32.totalorder %s9, 3
    %p68 = por %p66, %p67
    %p69 = scmp.ne.s32.totalorder %s61, %s64
    %p70 = scmp.eq.s32.totalorder %s9, 0
    %p71 = por %p69, %p70
    %p72 = scmp.ne.s32.totalorder %s61, %s64
    %p73 = scmp.eq.s32.totalorder %s14, 3
    %p74 = por %p72, %p73
    %p75 = scmp.ne.s32.totalorder %s64, %s65
    %p76 = scmp.eq.s32.totalorder %s14, 0
    %p77 = por %p75, %p76
    %p78 = scmp.ne.s32.totalorder %s64, %s65
    %p79 = scmp.eq.s32.totalorder %s15, 3
    %p80 = por %p78, %p79
    %p82 = scmp.ne.s32.totalorder %s65, %s81
    %p83 = scmp.eq.s32.totalorder %s15, 0
    %p84 = por %p82, %p83
    %s85 = ssub.s32 %s16, %s28
    %p86 = scmp.eq.s32.totalorder %s85, 0
    %s88 = sadd.s32 %s87, 1
    %s89 = scalar_select %p86, %s87, %s88
    %p92 = pneg %p86
    %p93 = scmp.eq.s32.totalorder %s9, 3
    %p94 = por %p92, %p93
    %p95 = scmp.ne.s32.totalorder %s87, %s90
    %p96 = scmp.eq.s32.totalorder %s9, 0
    %p97 = por %p95, %p96
    %p98 = scmp.ne.s32.totalorder %s87, %s90
    %p99 = scmp.eq.s32.totalorder %s14, 3
    %p100 = por %p98, %p99
    %p101 = scmp.ne.s32.totalorder %s90, %s91
    %p102 = scmp.eq.s32.totalorder %s14, 0
    %p103 = por %p101, %p102
    %p104 = scmp.ne.s32.totalorder %s90, %s91
    %p105 = scmp.eq.s32.totalorder %s15, 3
    %p106 = por %p104, %p105
    %p108 = scmp.ne.s32.totalorder %s91, %s107
    %p109 = scmp.eq.s32.totalorder %s15, 0
    %p110 = por %p108, %p109
    %s111 = ssub.s32 %s16, %s28
    %p112 = scmp.eq.s32.totalorder %s111, 0
    %s114 = sadd.s32 %s113, 1
    %s115 = scalar_select %p112, %s113, %s114
    %p118 = pneg %p112
    %p119 = scmp.eq.s32.totalorder %s9, 3
    %p120 = por %p118, %p119
    %p121 = scmp.ne.s32.totalorder %s113, %s116
    %p122 = scmp.eq.s32.totalorder %s9, 0
    %p123 = por %p121, %p122
    %p124 = scmp.ne.s32.totalorder %s113, %s116
    %p125 = scmp.eq.s32.totalorder %s14, 3
    %p126 = por %p124, %p125
    %p127 = scmp.ne.s32.totalorder %s116, %s117
    %p128 = scmp.eq.s32.totalorder %s14, 0
    %p129 = por %p127, %p128
    %p130 = scmp.ne.s32.totalorder %s116, %s117
    %p131 = scmp.eq.s32.totalorder %s15, 3
    %p132 = por %p130, %p131
    %p134 = scmp.ne.s32.totalorder %s117, %s133
    %p135 = scmp.eq.s32.totalorder %s15, 0
    %p136 = por %p134, %p135
    %p137 = scmp.le.s32.totalorder 1, %s9
    %p138 = scmp.lt.s32.totalorder %s9, 5
    %p139 = pnand %p137, %p138
    %p140 = pneg %p139
    // Predicated region
    $region9: #{abr_lovasz_ce_loss.3} parent=5 // pred_check
      _
    $region10: #{abr_lovasz_ce_loss.3} parent=5 // pred_check_branch
      %142 = sbr.rel (%p139) target = $region12
    $region11: #{abr_lovasz_ce_loss.3} parent=5 // pred_region
      %s143 = ssub.s32 %s9, 1
      // Predicated region
      $region13: #{abr_lovasz_ce_loss.3} parent=11 // pred_check
        %p144 = pneg %p103
      $region14: #{abr_lovasz_ce_loss.3} parent=11 // pred_check_branch
        %146 = sbr.rel (%p144) target = $region16
      $region15: #{abr_lovasz_ce_loss.3} parent=11 // pred_region
        %p147 = scmp.lt.s32.totalorder %s18, 0
        %s148 = scalar_select %p147, %s18, 0
        %s149 = smul.addr %s148, 8
        %s150 = scalar_lea.vmem %s2, %s149
      $region16: #{abr_lovasz_ce_loss.3} parent=11 // pred_fallthru
        _
    $region12: #{abr_lovasz_ce_loss.3} parent=5 // pred_fallthru
      _
    %p151 = scmp.lt.s32.totalorder %s9, 4
    // Predicated region
    $region17: #{abr_lovasz_ce_loss.3} parent=5 // pred_check
      %p152 = pneg %p151
    $region18: #{abr_lovasz_ce_loss.3} parent=5 // pred_check_branch
      %154 = sbr.rel (%p152) target = $region20
    $region19: #{abr_lovasz_ce_loss.3} parent=5 // pred_region
      // Predicated region
      $region21: #{abr_lovasz_ce_loss.3} parent=19 // pred_check
        %p155 = pneg %p43
      $region22: #{abr_lovasz_ce_loss.3} parent=19 // pred_check_branch
        %157 = sbr.rel (%p155) target = $region24
      $region23: #{abr_lovasz_ce_loss.3} parent=19 // pred_region
        %s158 = smul.u32 4, %s17
        %p159 = scmp.lt.s32.totalorder %s16, 0
        %s160 = scalar_select %p159, %s16, 0
        %p161 = scmp.lt.s32.totalorder %s158, 15
        %s162 = scalar_select %p161, %s158, 15
        %s163 = smul.addr %s160, 16
        %s164 = sadd.s32 %s162, %s163
        %s165 = smul.addr %s164, 8
        %s166 = scalar_lea.vmem %s0, %s165
        %s167 = smul.u32 4, %s17
      $region24: #{abr_lovasz_ce_loss.3} parent=19 // pred_fallthru
        _
      // Predicated region
      $region25: #{abr_lovasz_ce_loss.3} parent=19 // pred_check
        %p168 = pneg %p71
      $region26: #{abr_lovasz_ce_loss.3} parent=19 // pred_check_branch
        %170 = sbr.rel (%p168) target = $region28
      $region27: #{abr_lovasz_ce_loss.3} parent=19 // pred_region
        %s171 = smul.u32 4, %s17
        %p172 = scmp.lt.s32.totalorder %s16, 0
        %s173 = scalar_select %p172, %s16, 0
        %p174 = scmp.lt.s32.totalorder %s171, 15
        %s175 = scalar_select %p174, %s171, 15
        %s176 = smul.addr %s173, 16
        %s177 = sadd.s32 %s175, %s176
        %s178 = smul.addr %s177, 2
        %s179 = scalar_lea.vmem %s1, %s178
        %s180 = smul.u32 4, %s17
      $region28: #{abr_lovasz_ce_loss.3} parent=19 // pred_fallthru
        _
    $region20: #{abr_lovasz_ce_loss.3} parent=5 // pred_fallthru
      _
    %p181 = scmp.le.s32.totalorder 1, %s9
    %p182 = scmp.lt.s32.totalorder %s9, 5
    %p183 = pnand %p181, %p182
    %p184 = pneg %p183
    // Predicated region
    $region29: #{abr_lovasz_ce_loss.3} parent=5 // pred_check
      _
    $region30: #{abr_lovasz_ce_loss.3} parent=5 // pred_check_branch
      %186 = sbr.rel (%p183) target = $region32
    $region31: #{abr_lovasz_ce_loss.3} parent=5 // pred_region
      %s187 = ssub.s32 %s9, 1
      %s188 = smul.u32 4, %s19
      %p189 = scmp.lt.s32.totalorder %s18, 0
      %s190 = scalar_select %p189, %s18, 0
      %p191 = scmp.lt.s32.totalorder %s188, 15
      %s192 = scalar_select %p191, %s188, 15
      %s193 = smul.addr %s190, 16
      %s194 = sadd.s32 %s192, %s193
      %s195 = smul.addr %s194, 8
      %s196 = scalar_lea.vmem %s0, %s195
      %p197 = pneg %p49
      %p198 = pneg %p46
      %s199 = smul.u32 4, %s19
      %p200 = scmp.lt.s32.totalorder %s18, 0
      %s201 = scalar_select %p200, %s18, 0
      %p202 = scmp.lt.s32.totalorder %s199, 15
      %s203 = scalar_select %p202, %s199, 15
      %s204 = smul.addr %s201, 16
      %s205 = sadd.s32 %s203, %s204
      %s206 = smul.addr %s205, 2
      %s207 = scalar_lea.vmem %s1, %s206
      %p208 = pneg %p77
      %p209 = pneg %p74
      %p210 = scmp.lt.s32.totalorder %s18, 0
      %s211 = scalar_select %p210, %s18, 0
      %s212 = smul.addr %s211, 8
      %s213 = scalar_lea.vmem %s2, %s212
      %p214 = pneg %p103
      %p215 = pneg %p100
      %p216 = pneg %p129
      %p217 = pneg %p126
      %p218 = scmp.lt.s32.totalorder %s18, 0
      %s219 = scalar_select %p218, %s18, 0
      %s220 = smul.addr %s219, 8
      %s221 = scalar_lea.vmem %s3, %s220
      %s222 = smul.u32 4, %s19
      %p223 = scmp.lt.s32.totalorder %s18, 0
      %s224 = scalar_select %p223, %s18, 0
      %p225 = scmp.lt.s32.totalorder %s222, 15
      %s226 = scalar_select %p225, %s222, 15
      %s227 = smul.addr %s224, 16
      %s228 = sadd.s32 %s226, %s227
      %s229 = smul.addr %s228, 8
      %s230 = scalar_lea.vmem %s0, %s229
      %s231 = smul.u32 4, %s19
      %s232 = smul.u32 4, %s19
      %p233 = scmp.lt.s32.totalorder %s18, 0
      %s234 = scalar_select %p233, %s18, 0
      %p235 = scmp.lt.s32.totalorder %s232, 15
      %s236 = scalar_select %p235, %s232, 15
      %s237 = smul.addr %s234, 16
      %s238 = sadd.s32 %s236, %s237
      %s239 = smul.addr %s238, 2
      %s240 = scalar_lea.vmem %s1, %s239
      %s241 = smul.u32 4, %s19
      %p242 = scmp.lt.s32.totalorder %s18, 0
      %s243 = scalar_select %p242, %s18, 0
      %s244 = smul.addr %s243, 8
      %s245 = scalar_lea.vmem %s2, %s244
      %p246 = scmp.lt.s32.totalorder %s18, 0
      %s247 = scalar_select %p246, %s18, 0
      %s248 = smul.addr %s247, 8
      %s249 = scalar_lea.vmem %s3, %s248
      %p250 = scmp.eq.s32.totalorder %s19, 0
      // Predicated region
      $region33: #{abr_lovasz_ce_loss.3} parent=31 // pred_check
        %p251 = pneg %p250
      $region34: #{abr_lovasz_ce_loss.3} parent=31 // pred_check_branch
        %253 = sbr.rel (%p251) target = $region36
      $region35: #{abr_lovasz_ce_loss.3} parent=31 // pred_region
        %vm254 = vcmask 7168
        %255 = vst.msk [vmem:[#allocation2] sm:$0xff] %vm254, 0.0
        %256 = vst.msk [vmem:[#allocation3] sm:$0xff] %vm254, 0.0
        %257 = vst.msk [vmem:[%s249] sm:$0xff] %vm254, 0.0
      $region36: #{abr_lovasz_ce_loss.3} parent=31 // pred_fallthru
        _
      %v258 = vld [vmem:[%s230] sm:$0xff]
      %v259 = vld [vmem:[%s230 + $0x8] sm:$0xff]
      %v260 = vld [vmem:[%s230 + $0x10] sm:$0xff]
      %v261 = vld [vmem:[%s230 + $0x18] sm:$0xff]
      %v262 = vsub.f32 0.0, %v258
      %v263 = vsub.f32 0.0, %v259
      %v264 = vsub.f32 0.0, %v260
      %v265 = vsub.f32 0.0, %v261
      %v266 = vld [vmem:[%s240] sm:$0xff]
      %v267 = vunpack.c.0.s8 %v266
      %v268 = vunpack.c.1.s8 %v266
      %v269 = vunpack.c.2.s8 %v266
      %v270 = vunpack.c.3.s8 %v266
      %v271 = vcvt.s32.f32 %v267
      %v272 = vcvt.s32.f32 %v268
      %v273 = vcvt.s32.f32 %v269
      %v274 = vcvt.s32.f32 %v270
      %v275 = vlaneseq
      %v276 = vand.u32 %v275, 127
      %v277 = vadd.s32 %v276, 128
      %v278 = vadd.s32 %v276, 256
      %v279 = vadd.s32 %v276, 384
      %vm280 = vcmp.ge.s32.totalorder %v276, 1
      %vm281 = vcmp.ge.s32.totalorder %v277, 1
      %vm282 = vcmp.ge.s32.totalorder %v278, 1
      %vm283 = vcmp.ge.s32.totalorder %v279, 1
      %284 = vrot.lane.b32.xlu0 %v271, 1
      %v285 = vpop.permute.xlu0 %284
      %286 = vrot.lane.b32.xlu0 %v272, 1
      %v287 = vpop.permute.xlu0 %286
      %288 = vrot.lane.b32.xlu0 %v273, 1
      %v289 = vpop.permute.xlu0 %288
      %290 = vrot.lane.b32.xlu0 %v274, 1
      %v291 = vpop.permute.xlu0 %290
      %vm292 = vcmp.lt.s32.totalorder %v276, 1
      %v293 = vsel %vm292, %v289, %v291
      %v294 = vsel %vm292, %v287, %v289
      %v295 = vsel %vm292, %v285, %v287
      %v296 = vsel %vm292, %v291, %v285
      %v297 = vsel %vm280, %v296, 0.0
      %v298 = vsel %vm281, %v295, 0.0
      %v299 = vsel %vm282, %v294, 0.0
      %v300 = vsel %vm283, %v293, 0.0
      %v301 = vadd.f32 %v271, %v297
      %v302 = vadd.f32 %v272, %v298
      %v303 = vadd.f32 %v273, %v299
      %v304 = vadd.f32 %v274, %v300
      %vm305 = vcmp.ge.s32.totalorder %v276, 2
      %vm306 = vcmp.ge.s32.totalorder %v277, 2
      %vm307 = vcmp.ge.s32.totalorder %v278, 2
      %vm308 = vcmp.ge.s32.totalorder %v279, 2
      %309 = vrot.lane.b32.xlu0 %v301, 2
      %v310 = vpop.permute.xlu0 %309
      %311 = vrot.lane.b32.xlu0 %v302, 2
      %v312 = vpop.permute.xlu0 %311
      %313 = vrot.lane.b32.xlu0 %v303, 2
      %v314 = vpop.permute.xlu0 %313
      %315 = vrot.lane.b32.xlu0 %v304, 2
      %v316 = vpop.permute.xlu0 %315
      %vm317 = vcmp.lt.s32.totalorder %v276, 2
      %v318 = vsel %vm317, %v314, %v316
      %v319 = vsel %vm317, %v312, %v314
      %v320 = vsel %vm317, %v310, %v312
      %v321 = vsel %vm317, %v316, %v310
      %v322 = vsel %vm305, %v321, 0.0
      %v323 = vsel %vm306, %v320, 0.0
      %v324 = vsel %vm307, %v319, 0.0
      %v325 = vsel %vm308, %v318, 0.0
      %v326 = vadd.f32 %v301, %v322
      %v327 = vadd.f32 %v302, %v323
      %v328 = vadd.f32 %v303, %v324
      %v329 = vadd.f32 %v304, %v325
      %vm330 = vcmp.ge.s32.totalorder %v276, 4
      %vm331 = vcmp.ge.s32.totalorder %v277, 4
      %vm332 = vcmp.ge.s32.totalorder %v278, 4
      %vm333 = vcmp.ge.s32.totalorder %v279, 4
      %334 = vrot.lane.b32.xlu0 %v326, 4
      %v335 = vpop.permute.xlu0 %334
      %336 = vrot.lane.b32.xlu0 %v327, 4
      %v337 = vpop.permute.xlu0 %336
      %338 = vrot.lane.b32.xlu0 %v328, 4
      %v339 = vpop.permute.xlu0 %338
      %340 = vrot.lane.b32.xlu0 %v329, 4
      %v341 = vpop.permute.xlu0 %340
      %vm342 = vcmp.lt.s32.totalorder %v276, 4
      %v343 = vsel %vm342, %v339, %v341
      %v344 = vsel %vm342, %v337, %v339
      %v345 = vsel %vm342, %v335, %v337
      %v346 = vsel %vm342, %v341, %v335
      %v347 = vsel %vm330, %v346, 0.0
      %v348 = vsel %vm331, %v345, 0.0
      %v349 = vsel %vm332, %v344, 0.0
      %v350 = vsel %vm333, %v343, 0.0
      %v351 = vadd.f32 %v326, %v347
      %v352 = vadd.f32 %v327, %v348
      %v353 = vadd.f32 %v328, %v349
      %v354 = vadd.f32 %v329, %v350
      %vm355 = vcmp.ge.s32.totalorder %v276, 8
      %vm356 = vcmp.ge.s32.totalorder %v277, 8
      %vm357 = vcmp.ge.s32.totalorder %v278, 8
      %vm358 = vcmp.ge.s32.totalorder %v279, 8
      %359 = vrot.lane.b32.xlu0 %v351, 8
      %v360 = vpop.permute.xlu0 %359
      %361 = vrot.lane.b32.xlu0 %v352, 8
      %v362 = vpop.permute.xlu0 %361
      %363 = vrot.lane.b32.xlu0 %v353, 8
      %v364 = vpop.permute.xlu0 %363
      %365 = vrot.lane.b32.xlu0 %v354, 8
      %v366 = vpop.permute.xlu0 %365
      %vm367 = vcmp.lt.s32.totalorder %v276, 8
      %v368 = vsel %vm367, %v364, %v366
      %v369 = vsel %vm367, %v362, %v364
      %v370 = vsel %vm367, %v360, %v362
      %v371 = vsel %vm367, %v366, %v360
      %v372 = vsel %vm355, %v371, 0.0
      %v373 = vsel %vm356, %v370, 0.0
      %v374 = vsel %vm357, %v369, 0.0
      %v375 = vsel %vm358, %v368, 0.0
      %v376 = vadd.f32 %v351, %v372
      %v377 = vadd.f32 %v352, %v373
      %v378 = vadd.f32 %v353, %v374
      %v379 = vadd.f32 %v354, %v375
      %vm380 = vcmp.ge.s32.totalorder %v276, 16
      %vm381 = vcmp.ge.s32.totalorder %v277, 16
      %vm382 = vcmp.ge.s32.totalorder %v278, 16
      %vm383 = vcmp.ge.s32.totalorder %v279, 16
      %384 = vrot.lane.b32.xlu0 %v376, 16
      %v385 = vpop.permute.xlu0 %384
      %386 = vrot.lane.b32.xlu0 %v377, 16
      %v387 = vpop.permute.xlu0 %386
      %388 = vrot.lane.b32.xlu0 %v378, 16
      %v389 = vpop.permute.xlu0 %388
      %390 = vrot.lane.b32.xlu0 %v379, 16
      %v391 = vpop.permute.xlu0 %390
      %vm392 = vcmp.lt.s32.totalorder %v276, 16
      %v393 = vsel %vm392, %v389, %v391
      %v394 = vsel %vm392, %v387, %v389
      %v395 = vsel %vm392, %v385, %v387
      %v396 = vsel %vm392, %v391, %v385
      %v397 = vsel %vm380, %v396, 0.0
      %v398 = vsel %vm381, %v395, 0.0
      %v399 = vsel %vm382, %v394, 0.0
      %v400 = vsel %vm383, %v393, 0.0
      %v401 = vadd.f32 %v376, %v397
      %v402 = vadd.f32 %v377, %v398
      %v403 = vadd.f32 %v378, %v399
      %v404 = vadd.f32 %v379, %v400
      %vm405 = vcmp.ge.s32.totalorder %v276, 32
      %vm406 = vcmp.ge.s32.totalorder %v277, 32
      %vm407 = vcmp.ge.s32.totalorder %v278, 32
      %vm408 = vcmp.ge.s32.totalorder %v279, 32
      %409 = vrot.lane.b32.xlu0 %v401, 32
      %v410 = vpop.permute.xlu0 %409
      %411 = vrot.lane.b32.xlu0 %v402, 32
      %v412 = vpop.permute.xlu0 %411
      %413 = vrot.lane.b32.xlu0 %v403, 32
      %v414 = vpop.permute.xlu0 %413
      %415 = vrot.lane.b32.xlu0 %v404, 32
      %v416 = vpop.permute.xlu0 %415
      %vm417 = vcmp.lt.s32.totalorder %v276, 32
      %v418 = vsel %vm417, %v414, %v416
      %v419 = vsel %vm417, %v412, %v414
      %v420 = vsel %vm417, %v410, %v412
      %v421 = vsel %vm417, %v416, %v410
      %v422 = vsel %vm405, %v421, 0.0
      %v423 = vsel %vm406, %v420, 0.0
      %v424 = vsel %vm407, %v419, 0.0
      %v425 = vsel %vm408, %v418, 0.0
      %v426 = vadd.f32 %v401, %v422
      %v427 = vadd.f32 %v402, %v423
      %v428 = vadd.f32 %v403, %v424
      %v429 = vadd.f32 %v404, %v425
      %vm430 = vcmp.ge.s32.totalorder %v276, 64
      %vm431 = vcmp.ge.s32.totalorder %v277, 64
      %vm432 = vcmp.ge.s32.totalorder %v278, 64
      %vm433 = vcmp.ge.s32.totalorder %v279, 64
      %434 = vrot.lane.b32.xlu0 %v426, 64
      %v435 = vpop.permute.xlu0 %434
      %436 = vrot.lane.b32.xlu0 %v427, 64
      %v437 = vpop.permute.xlu0 %436
      %438 = vrot.lane.b32.xlu0 %v428, 64
      %v439 = vpop.permute.xlu0 %438
      %440 = vrot.lane.b32.xlu0 %v429, 64
      %v441 = vpop.permute.xlu0 %440
      %vm442 = vcmp.lt.s32.totalorder %v276, 64
      %v443 = vsel %vm442, %v439, %v441
      %v444 = vsel %vm442, %v437, %v439
      %v445 = vsel %vm442, %v435, %v437
      %v446 = vsel %vm442, %v441, %v435
      %v447 = vsel %vm430, %v446, 0.0
      %v448 = vsel %vm431, %v445, 0.0
      %v449 = vsel %vm432, %v444, 0.0
      %v450 = vsel %vm433, %v443, 0.0
      %v451 = vadd.f32 %v426, %v447
      %v452 = vadd.f32 %v427, %v448
      %v453 = vadd.f32 %v428, %v449
      %v454 = vadd.f32 %v429, %v450
      %vm455 = vcmp.ge.s32.totalorder %v276, 128
      %vm456 = vcmp.ge.s32.totalorder %v277, 128
      %vm457 = vcmp.ge.s32.totalorder %v278, 128
      %vm458 = vcmp.ge.s32.totalorder %v279, 128
      %v459 = vsel %vm455, %v454, 0.0
      %v460 = vsel %vm456, %v451, 0.0
      %v461 = vsel %vm457, %v452, 0.0
      %v462 = vsel %vm458, %v453, 0.0
      %v463 = vadd.f32 %v451, %v459
      %v464 = vadd.f32 %v452, %v460
      %v465 = vadd.f32 %v453, %v461
      %v466 = vadd.f32 %v454, %v462
      %vm467 = vcmp.ge.s32.totalorder %v276, 256
      %vm468 = vcmp.ge.s32.totalorder %v277, 256
      %vm469 = vcmp.ge.s32.totalorder %v278, 256
      %vm470 = vcmp.ge.s32.totalorder %v279, 256
      %v471 = vsel %vm467, %v465, 0.0
      %v472 = vsel %vm468, %v466, 0.0
      %v473 = vsel %vm469, %v463, 0.0
      %v474 = vsel %vm470, %v464, 0.0
      %v475 = vadd.f32 %v463, %v471
      %v476 = vadd.f32 %v464, %v472
      %v477 = vadd.f32 %v465, %v473
      %v478 = vadd.f32 %v466, %v474
      %v479 = vld [vmem:[#allocation2] sm:$0xff]
      %481 = vset.pattern.permute.xlu0 0
      %482 = vperm.xlu0 %481, %v479
      %v483 = vpop.permute.xlu0 %482
      %v485 = vadd.f32 %v483, %v475
      %v486 = vadd.f32 %v483, %v476
      %v487 = vadd.f32 %v483, %v477
      %v488 = vadd.f32 %v483, %v478
      %v489 = vld [vmem:[%s245] sm:$0xff]
      %v490 = vadd.s32 %v276, 1
      %v491 = vadd.s32 %v277, 1
      %v492 = vadd.s32 %v278, 1
      %v493 = vadd.s32 %v279, 1
      %s494 = smul.u32 %s19, 512
      %v495 = vstv %s494
      %v496 = vadd.s32 %v490, %v495
      %v497 = vadd.s32 %v491, %v495
      %v498 = vadd.s32 %v492, %v495
      %v499 = vadd.s32 %v493, %v495
      %v500 = vcvt.s32.f32 %v496
      %v501 = vcvt.s32.f32 %v497
      %v502 = vcvt.s32.f32 %v498
      %v503 = vcvt.s32.f32 %v499
      %505 = vset.pattern.permute.xlu0 0
      %506 = vperm.xlu0 %505, %v489
      %v507 = vpop.permute.xlu0 %506
      %v509 = vsub.f32 %v507, %v485
      %v510 = vsub.f32 %v507, %v486
      %v511 = vsub.f32 %v507, %v487
      %v512 = vsub.f32 %v507, %v488
      %v513 = vsub.f32 %v500, %v485
      %v514 = vsub.f32 %v501, %v486
      %v515 = vsub.f32 %v502, %v487
      %v516 = vsub.f32 %v503, %v488
      %v517 = vadd.f32 %v507, %v513
      %v518 = vadd.f32 %v507, %v514
      %v519 = vadd.f32 %v507, %v515
      %v520 = vadd.f32 %v507, %v516
      %v521 = vrcp.pop %v517
      %v522 = vmul.f32 %v509, %v521
      %v523 = vrcp.pop %v518
      %v524 = vmul.f32 %v510, %v523
      %v525 = vrcp.pop %v519
      %v526 = vmul.f32 %v511, %v525
      %v527 = vrcp.pop %v520
      %v528 = vmul.f32 %v512, %v527
      %v529 = vsub.f32 1.0, %v522
      %v530 = vsub.f32 1.0, %v524
      %v531 = vsub.f32 1.0, %v526
      %v532 = vsub.f32 1.0, %v528
      %533 = vrot.lane.b32.xlu0 %v529, 1
      %v534 = vpop.permute.xlu0 %533
      %535 = vrot.lane.b32.xlu0 %v530, 1
      %v536 = vpop.permute.xlu0 %535
      %537 = vrot.lane.b32.xlu0 %v531, 1
      %v538 = vpop.permute.xlu0 %537
      %539 = vrot.lane.b32.xlu0 %v532, 1
      %v540 = vpop.permute.xlu0 %539
      %v541 = vsel %vm292, %v538, %v540
      %v542 = vsel %vm292, %v536, %v538
      %v543 = vsel %vm292, %v534, %v536
      %v544 = vsel %vm292, %v540, %v534
      %vm545 = vcmp.eq.s32.totalorder %v276, 0
      %vm546 = vcmp.eq.s32.totalorder %v277, 0
      %vm547 = vcmp.eq.s32.totalorder %v278, 0
      %vm548 = vcmp.eq.s32.totalorder %v279, 0
      %v549 = vld [vmem:[#allocation3] sm:$0xff]
      %551 = vset.pattern.permute.xlu0 0
      %552 = vperm.xlu0 %551, %v549
      %v553 = vpop.permute.xlu0 %552
      %v555 = vsel %vm545, %v553, %v544
      %v556 = vsel %vm546, %v553, %v543
      %v557 = vsel %vm547, %v553, %v542
      %v558 = vsel %vm548, %v553, %v541
      %v559 = vsub.f32 %v529, %v555
      %v560 = vsub.f32 %v530, %v556
      %v561 = vsub.f32 %v531, %v557
      %v562 = vsub.f32 %v532, %v558
      %v563 = vld [vmem:[%s249] sm:$0xff]
      %v564 = vmul.f32 %v262, %v559
      %v565 = vmul.f32 %v263, %v560
      %v566 = vmul.f32 %v264, %v561
      %v567 = vmul.f32 %v265, %v562
      %v568 = vadd.f32 %v564, %v565
      %v569 = vadd.f32 %v568, %v566
      %v570 = vadd.f32 %v569, %v567
      %571 = vadd.xlane.f32.xlu0 %v570
      %v572 = vpop.xlane.xlu0 %571
      %v573 = vadd.f32 %v563, %v572
      %vm574 = vcmask 7168
      %575 = vst.msk [vmem:[%s249] sm:$0xff] %vm574, %v573
      %577 = vrot.lane.b32.xlu0 %v488, 1
      %v578 = vpop.permute.xlu0 %577
      %580 = vst.msk [vmem:[#allocation2] sm:$0xff] %vm574, %v578
      %582 = vrot.lane.b32.xlu0 %v532, 1
      %v583 = vpop.permute.xlu0 %582
      %585 = vst.msk [vmem:[#allocation3] sm:$0xff] %vm574, %v583
      %p586 = scmp.lt.s32.totalorder %s18, 0
      %s587 = scalar_select %p586, %s18, 0
      %s588 = smul.addr %s587, 8
      %s589 = scalar_lea.vmem %s3, %s588
      // Predicated region
      $region37: #{abr_lovasz_ce_loss.3} parent=31 // pred_check
        %p590 = pneg %p126
      $region38: #{abr_lovasz_ce_loss.3} parent=31 // pred_check_branch
        %592 = sbr.rel (%p590) target = $region40
      $region39: #{abr_lovasz_ce_loss.3} parent=31 // pred_region
        _
      $region40: #{abr_lovasz_ce_loss.3} parent=31 // pred_fallthru
        _
      // Predicated region
      $region41: #{abr_lovasz_ce_loss.3} parent=31 // pred_check
        %p593 = pneg %p126
      $region42: #{abr_lovasz_ce_loss.3} parent=31 // pred_check_branch
        %595 = sbr.rel (%p593) target = $region44
      $region43: #{abr_lovasz_ce_loss.3} parent=31 // pred_region
        %p596 = scmp.lt.s32.totalorder %s18, 0
        %s597 = scalar_select %p596, %s18, 0
        %s598 = smul.addr %s597, 8
        %s599 = scalar_lea.vmem %s3, %s598
      $region44: #{abr_lovasz_ce_loss.3} parent=31 // pred_fallthru
        _
    $region32: #{abr_lovasz_ce_loss.3} parent=5 // pred_fallthru
      _
    %p600 = scmp.le.s32.totalorder 2, %s9
    // Predicated region
    $region45: #{abr_lovasz_ce_loss.3} parent=5 // pred_check
      %p601 = pneg %p600
    $region46: #{abr_lovasz_ce_loss.3} parent=5 // pred_check_branch
      %603 = sbr.rel (%p601) target = $region48
    $region47: #{abr_lovasz_ce_loss.3} parent=5 // pred_region
      %s604 = ssub.s32 %s9, 2
    $region48: #{abr_lovasz_ce_loss.3} parent=5 // pred_fallthru
      _
  $region6: #{abr_lovasz_ce_loss.3} parent=0 // loop_footer
    %s13 = sadd.s32 1, %s9
  $region7: #{abr_lovasz_ce_loss.3} parent=0 // loop_footer_branch
    %8 = sbr.rel target = $region3
  $region8: #{abr_lovasz_ce_loss.3} parent=0 // loop_exit
    _

</llo_original>
